<compile_context>
chip_gen: v7x
topology: tpu7x:2x2x1
jax: 0.10.0
libtpu: 0.0.40
codegen_flags: <defaults>
</compile_context>

<pallas_src>
import functools

import jax
import jax.numpy as jnp
from jax import lax
from jax.experimental import pallas as pl
from jax.experimental.pallas import tpu as pltpu


def _round_up(n, m):
    return ((n + m - 1) // m) * m


def _vmem_capacity_bytes():
    try:
        return int(pltpu.get_tpu_info().vmem_capacity_bytes)
    except Exception:
        return 64 << 20  # conservative (v7x-sized) fallback


def _largest_divisor_leq(n, cap):
    best = 1
    for d in range(1, n + 1):
        if n % d == 0 and d <= cap:
            best = d
    return best


def _rnn_kernel(num_layers, seq_len, batch_tile, hidden_pad, compute_dtype,
                unroll, proj_chunk, *refs):
    """refs = (xproj_ref,
               whh0_t, [wih_t_l, whh_t_l, bias_l for l=1..L-1], wout_t, bout,
               out_ref,
               [seq_hid, seq_pre]   # VMEM scratch, only when num_layers > 1)."""
    T, tb, Hp = seq_len, batch_tile, hidden_pad

    xproj_ref = refs[0]                       # (T, tb, Hp) f32 layer-0 preactivations
    n_w = 3 * num_layers                      # whh0 + 3*(L-1) + wout + bout
    w = refs[1:1 + n_w]
    out_ref = refs[1 + n_w]
    seq_hid = refs[2 + n_w] if num_layers > 1 else None   # hidden sequence of layer l
    seq_pre = refs[3 + n_w] if num_layers > 1 else None   # preactivations of layer l+1

    zero_h = jnp.zeros((tb, Hp), jnp.float32)

    # ---- layer 0: x @ W_ih0^T + b_ih0 + b_hh0 arrives pre-computed from the
    # wrapper, so the serial time loop only does the recurrent matmul + tanh.
    whh0_t = w[0][...]

    def step0(t, h_carry):
        pre = xproj_ref[t] + jnp.dot(h_carry.astype(compute_dtype), whh0_t,
                                     preferred_element_type=jnp.float32)
        h_new = jnp.tanh(pre)                 # f32 tanh / f32 hidden state
        if num_layers > 1:
            seq_hid[pl.ds(pl.multiple_of(t * tb, tb), tb), :] = h_new
        return h_new

    h = lax.fori_loop(0, T, step0, zero_h, unroll=unroll)

    # ---- layers 1..L-1: ping-pong buffers.  Bulk-project seq_hid -> seq_pre in
    # time chunks (distinct src/dst => streaming, bounded vreg pressure), then
    # the recurrence reads seq_pre and overwrites seq_hid with this layer's
    # hidden sequence (layer l-1's hiddens were fully consumed by the projection).
    for l in range(1, num_layers):
        wih_t = w[1 + 3 * (l - 1)][...]       # (Hp, Hp) compute_dtype
        whh_t = w[2 + 3 * (l - 1)][...]       # (Hp, Hp) compute_dtype
        bias = w[3 + 3 * (l - 1)][...]        # (1, Hp)  f32  (b_ih + b_hh)
        is_last = l == num_layers - 1

        rows = proj_chunk * tb

        @pl.loop(0, T // proj_chunk)
        def _(c):
            off = pl.multiple_of(c * rows, rows)
            seq_pre[pl.ds(off, rows), :] = (
                jnp.dot(seq_hid[pl.ds(off, rows), :].astype(compute_dtype),
                        wih_t, preferred_element_type=jnp.float32) + bias)

        def step(t, h_carry):
            row = pl.multiple_of(t * tb, tb)
            pre = seq_pre[pl.ds(row, tb), :] + jnp.dot(
                h_carry.astype(compute_dtype), whh_t,
                preferred_element_type=jnp.float32)
            h_new = jnp.tanh(pre)
            if not is_last:
                seq_hid[pl.ds(row, tb), :] = h_new
            return h_new

        h = lax.fori_loop(0, T, step, zero_h, unroll=unroll)

    # ---- linear head on the final hidden state of the last layer ----
    wout_t = w[n_w - 2][...]                  # (Hp, Op) compute_dtype
    bout = w[n_w - 1][...]                    # (1, Op)  f32
    out_ref[...] = (jnp.dot(h.astype(compute_dtype), wout_t,
                            preferred_element_type=jnp.float32)
                    + bout).astype(out_ref.dtype)


def prepare_params(params, *, input_size, hidden_size, num_layers, output_size,
                   compute_dtype=jnp.float32):
    """One-time prep: transpose, fuse biases, zero-pad to (8,128) tiles, cast.

    Layer 0's input weights/bias are kept un-padded (f32) for the wrapper-side
    projection; everything else is padded for the kernel."""
    Hp = _round_up(hidden_size, 128)
    Op = _round_up(output_size, 128)
    H = hidden_size

    w_ih0, w_hh0, b_ih0, b_hh0 = params["rnn"][0]
    proj0_w = jnp.transpose(w_ih0).astype(jnp.float32)            # (I, H)
    proj0_b = (b_ih0 + b_hh0).astype(jnp.float32)                 # (H,)

    kparams = []
    whh0_t = jnp.zeros((Hp, Hp), compute_dtype).at[:H, :H].set(
        jnp.transpose(w_hh0).astype(compute_dtype))
    kparams.append(whh0_t)

    for l in range(1, num_layers):
        w_ih, w_hh, b_ih, b_hh = params["rnn"][l]
        wih_t = jnp.zeros((Hp, Hp), compute_dtype).at[:H, :H].set(
            jnp.transpose(w_ih).astype(compute_dtype))
        whh_t = jnp.zeros((Hp, Hp), compute_dtype).at[:H, :H].set(
            jnp.transpose(w_hh).astype(compute_dtype))
        bias = jnp.zeros((1, Hp), jnp.float32).at[0, :H].set(
            (b_ih + b_hh).astype(jnp.float32))
        kparams += [wih_t, whh_t, bias]

    wout_t = jnp.zeros((Hp, Op), compute_dtype).at[:H, :output_size].set(
        jnp.transpose(params["w_out"]).astype(compute_dtype))
    bout = jnp.zeros((1, Op), jnp.float32).at[0, :output_size].set(
        params["b_out"].astype(jnp.float32))
    kparams += [wout_t, bout]

    return {"proj0_w": proj0_w, "proj0_b": proj0_b, "kernel": kparams,
            "hidden_pad": Hp, "out_pad": Op}


def rnn_classifier_forward(x, prepped, *, hidden_size, num_layers, output_size,
                           batch_tile=None, compute_dtype=jnp.float32, unroll=8):
    """x: (B, T, I) float32; prepped: output of prepare_params."""
    B, T, _ = x.shape
    Hp = prepped["hidden_pad"]
    Op = prepped["out_pad"]
    kparams = prepped["kernel"]
    assert len(kparams) == 3 * num_layers

    # ---- VMEM-aware batch-tile selection ----
    cap = _vmem_capacity_bytes()
    usable = int(0.75 * cap)
    weight_bytes = sum(2 * a.size * a.dtype.itemsize for a in kparams)  # 2x: default double-buffering
    n_seq = 2 if num_layers > 1 else 0
    per_row = (2 + n_seq) * T * Hp * 4 + 2 * Op * 4   # xproj block (x2) + seq scratch + out block (x2)
    tb_cap = max(8, ((usable - weight_bytes) // max(per_row, 1)) // 8 * 8)

    Bp8 = _round_up(B, 8)
    if batch_tile is None:
        tb = min(128, Bp8)
        # v7x has 2 TensorCores: ensure >=2 grid steps when the halved tile still
        # keeps the recurrent matmul's MXU fill decent (>= 64 rows).
        if tb == Bp8 and Bp8 >= 128:
            tb = max(64, _round_up(Bp8 // 2, 8))
    else:
        tb = batch_tile
    tb = max(8, min(_round_up(tb, 8), max(8, tb_cap)))

    Bp = _round_up(B, tb)
    n_b = Bp // tb
    unroll_eff = max(1, min(unroll, T))

    # Bulk-projection time chunk: ~512 rows per chunk, must divide T.
    proj_chunk = _largest_divisor_leq(T, max(1, 512 // tb))
    assert T % proj_chunk == 0

    # ---- Layer-0 projection + bias fold in XLA, fused with the time-major
    # transpose; zero-pad batch/hidden.  Zero padding keeps padded lanes exactly
    # 0 through tanh (invariant relied on by the kernel). ----
    proj0 = jnp.einsum("bti,ih->tbh", x.astype(jnp.float32), prepped["proj0_w"],
                       precision=lax.Precision.HIGHEST) + prepped["proj0_b"]
    x_proj = jnp.pad(proj0, ((0, 0), (0, Bp - B), (0, Hp - hidden_size)))

    kernel = functools.partial(_rnn_kernel, num_layers, T, tb, Hp, compute_dtype,
                               unroll_eff, proj_chunk)

    # Weights stay resident (constant index_map, block == full array).
    weight_specs = [
        pl.BlockSpec(a.shape, lambda b, nd=a.ndim: (0,) * nd) for a in kparams
    ]

    # Device-aware VMEM budget with headroom for compiler-internal scratch.
    need = weight_bytes + tb * per_row + (4 << 20)
    vmem_limit = int(max(32 << 20, min(int(0.85 * cap), int(1.25 * need))))

    scratch_shapes = ([pltpu.VMEM((T * tb, Hp), jnp.float32)] * 2
                      if num_layers > 1 else [])

    out_p = pl.pallas_call(
        kernel,
        out_shape=jax.ShapeDtypeStruct((Bp, Op), jnp.float32),
        grid=(n_b,),
        in_specs=[pl.BlockSpec((T, tb, Hp), lambda b: (0, b, 0))] + weight_specs,
        out_specs=pl.BlockSpec((tb, Op), lambda b: (b, 0)),
        scratch_shapes=scratch_shapes,
        compiler_params=pltpu.CompilerParams(
            dimension_semantics=("parallel",),
            vmem_limit_bytes=vmem_limit),
    )(x_proj, *kparams)

    return out_p[:B, :output_size]


def init_params(key, input_size, hidden_size, num_layers, output_size):
    """Deterministic init mimicking PyTorch's U(-1/sqrt(H), 1/sqrt(H))."""
    bound = 1.0 / (hidden_size ** 0.5)
    rnn_layers = []
    for l in range(num_layers):
        in_dim = input_size if l == 0 else hidden_size
        key, k1, k2, k3, k4 = jax.random.split(key, 5)
        w_ih = jax.random.uniform(k1, (hidden_size, in_dim), jnp.float32, -bound, bound)
        w_hh = jax.random.uniform(k2, (hidden_size, hidden_size), jnp.float32, -bound, bound)
        b_ih = jax.random.uniform(k3, (hidden_size,), jnp.float32, -bound, bound)
        b_hh = jax.random.uniform(k4, (hidden_size,), jnp.float32, -bound, bound)
        rnn_layers.append((w_ih, w_hh, b_ih, b_hh))
    key, k1, k2 = jax.random.split(key, 3)
    w_out = jax.random.uniform(k1, (output_size, hidden_size), jnp.float32, -bound, bound)
    b_out = jax.random.uniform(k2, (output_size,), jnp.float32, -bound, bound)
    return {"rnn": rnn_layers, "w_out": w_out, "b_out": b_out}


def reference_forward(x, params, *, num_layers, hidden_size, output_size):
    """Pure-JAX reference implementing nn.RNN(tanh) + Linear, for validation."""
    B, T, _ = x.shape
    layer_in = x
    h_last = jnp.zeros((B, hidden_size), jnp.float32)
    for l in range(num_layers):
        w_ih, w_hh, b_ih, b_hh = params["rnn"][l]
        h = jnp.zeros((B, hidden_size), jnp.float32)
        outs = []
        for t in range(T):
            h = jnp.tanh(layer_in[:, t, :] @ w_ih.T + b_ih + h @ w_hh.T + b_hh)
            outs.append(h)
        layer_in = jnp.stack(outs, axis=1)
        h_last = h
    return h_last @ params["w_out"].T + params["b_out"]


if __name__ == "__main__":
    # Small shapes consistent with the module's forward.
    batch = 2
    seq_len = 8
    input_size = 4
    hidden_size = 32
    num_layers = 2
    output_size = 3

    key = jax.random.PRNGKey(0)
    key, xk, pk = jax.random.split(key, 3)
    x = jax.random.normal(xk, (batch, seq_len, input_size), jnp.float32)
    params = init_params(pk, input_size, hidden_size, num_layers, output_size)

    # One-time parameter prep (transpose / bias-fold / pad / cast).
    # NOTE: on v6e/v7x use compute_dtype=jnp.bfloat16 for MXU peak (f32 accumulate
    # and f32 tanh/hidden state are kept inside the kernel); f32 here so the
    # 1e-5 check against the pure-JAX reference holds exactly.
    compute_dtype = jnp.float32
    prepped = prepare_params(
        params, input_size=input_size, hidden_size=hidden_size,
        num_layers=num_layers, output_size=output_size, compute_dtype=compute_dtype)

    fwd = jax.jit(lambda xx: rnn_classifier_forward(
        xx, prepped,
        hidden_size=hidden_size, num_layers=num_layers, output_size=output_size,
        compute_dtype=compute_dtype))

    out = jax.block_until_ready(fwd(x))

    ref = reference_forward(
        x, params,
        num_layers=num_layers, hidden_size=hidden_size, output_size=output_size)
    assert out.shape == (batch, output_size)
    assert jnp.allclose(out, ref, atol=1e-5, rtol=1e-5), "mismatch vs pure-JAX reference"

    print("KERNEL_OK")
</pallas_src>

<mosaic_0001>
module attributes {stable_mosaic.version = 11 : i64} {
  func.func @_rnn_kernel(%arg0: i32, %arg1: memref<8x8x128xf32, #tpu.memory_space<vmem>>, %arg2: memref<128x128xf32, #tpu.memory_space<vmem>>, %arg3: memref<128x128xf32, #tpu.memory_space<vmem>>, %arg4: memref<128x128xf32, #tpu.memory_space<vmem>>, %arg5: memref<1x128xf32, #tpu.memory_space<vmem>>, %arg6: memref<128x128xf32, #tpu.memory_space<vmem>>, %arg7: memref<1x128xf32, #tpu.memory_space<vmem>>, %arg8: memref<8x128xf32, #tpu.memory_space<vmem>>, %arg9: memref<64x128xf32, #tpu.memory_space<vmem>>, %arg10: memref<64x128xf32, #tpu.memory_space<vmem>>) attributes {dimension_semantics = [#tpu.dimension_semantics<parallel>], iteration_bounds = array<i64: 1>, scalar_prefetch = 0 : i64, scratch_operands = 2 : i64, tpu.core_type = #tpu.core_type<tc>, window_params = [{transform_indices = @transform_0, window_bounds = array<i64: 8, 8, 128>}, {pipeline_mode = #tpu.pipeline_mode<synchronous>, transform_indices = @transform_1, window_bounds = array<i64: 128, 128>}, {pipeline_mode = #tpu.pipeline_mode<synchronous>, transform_indices = @transform_2, window_bounds = array<i64: 128, 128>}, {pipeline_mode = #tpu.pipeline_mode<synchronous>, transform_indices = @transform_3, window_bounds = array<i64: 128, 128>}, {pipeline_mode = #tpu.pipeline_mode<synchronous>, transform_indices = @transform_4, window_bounds = array<i64: 1, 128>}, {pipeline_mode = #tpu.pipeline_mode<synchronous>, transform_indices = @transform_5, window_bounds = array<i64: 128, 128>}, {pipeline_mode = #tpu.pipeline_mode<synchronous>, transform_indices = @transform_6, window_bounds = array<i64: 1, 128>}, {transform_indices = @transform_7, window_bounds = array<i64: 8, 128>}]} {
    %cst = arith.constant 0.000000e+00 : f32
    %0 = vector.broadcast %cst : f32 to vector<8x128xf32>
    %c0 = arith.constant 0 : index
    %c0_0 = arith.constant 0 : index
    %1 = vector.load %arg2[%c0, %c0_0] : memref<128x128xf32, #tpu.memory_space<vmem>>, vector<128x128xf32>
    %c0_i32 = arith.constant 0 : i32
    %2 = arith.index_cast %c0_i32 : i32 to index
    %c0_1 = arith.constant 0 : index
    %c0_2 = arith.constant 0 : index
    %3 = vector.load %arg1[%2, %c0_1, %c0_2] : memref<8x8x128xf32, #tpu.memory_space<vmem>>, vector<1x8x128xf32>
    %4 = vector.shape_cast %3 : vector<1x8x128xf32> to vector<8x128xf32>
    %cst_3 = arith.constant dense<0.000000e+00> : vector<8x128xf32>
    %5 = tpu.matmul %0, %1, %cst_3 {dimension_numbers = #tpu.dot_dimension_numbers<[1], [0], [0], [1], [0, 0, 1, 1], [], []>} : vector<8x128xf32>, vector<128x128xf32>, vector<8x128xf32> -> vector<8x128xf32>
    %6 = arith.addf %4, %5 : vector<8x128xf32>
    %7 = math.tanh %6 : vector<8x128xf32>
    %c8_i32 = arith.constant 8 : i32
    %8 = arith.muli %c0_i32, %c8_i32 : i32
    %9 = tpu.assume_multiple %8, 8 : i32
    %10 = arith.index_cast %9 : i32 to index
    %c0_4 = arith.constant 0 : index
    %11 = vector.load %arg9[%10, %c0_4] : memref<64x128xf32, #tpu.memory_space<vmem>>, vector<8x128xf32>
    tpu.vector_store %arg9[%10, %c0_4], %7 {strides = array<i32>} : memref<64x128xf32, #tpu.memory_space<vmem>>, vector<8x128xf32>,
    %c1_i32 = arith.constant 1 : i32
    %12 = arith.index_cast %c1_i32 : i32 to index
    %c0_5 = arith.constant 0 : index
    %c0_6 = arith.constant 0 : index
    %13 = vector.load %arg1[%12, %c0_5, %c0_6] : memref<8x8x128xf32, #tpu.memory_space<vmem>>, vector<1x8x128xf32>
    %14 = vector.shape_cast %13 : vector<1x8x128xf32> to vector<8x128xf32>
    %cst_7 = arith.constant dense<0.000000e+00> : vector<8x128xf32>
    %15 = tpu.matmul %7, %1, %cst_7 {dimension_numbers = #tpu.dot_dimension_numbers<[1], [0], [0], [1], [0, 0, 1, 1], [], []>} : vector<8x128xf32>, vector<128x128xf32>, vector<8x128xf32> -> vector<8x128xf32>
    %16 = arith.addf %14, %15 : vector<8x128xf32>
    %17 = math.tanh %16 : vector<8x128xf32>
    %c8_i32_8 = arith.constant 8 : i32
    %18 = arith.muli %c1_i32, %c8_i32_8 : i32
    %19 = tpu.assume_multiple %18, 8 : i32
    %20 = arith.index_cast %19 : i32 to index
    %c0_9 = arith.constant 0 : index
    %21 = vector.load %arg9[%20, %c0_9] : memref<64x128xf32, #tpu.memory_space<vmem>>, vector<8x128xf32>
    tpu.vector_store %arg9[%20, %c0_9], %17 {strides = array<i32>} : memref<64x128xf32, #tpu.memory_space<vmem>>, vector<8x128xf32>,
    %c2_i32 = arith.constant 2 : i32
    %22 = arith.index_cast %c2_i32 : i32 to index
    %c0_10 = arith.constant 0 : index
    %c0_11 = arith.constant 0 : index
    %23 = vector.load %arg1[%22, %c0_10, %c0_11] : memref<8x8x128xf32, #tpu.memory_space<vmem>>, vector<1x8x128xf32>
    %24 = vector.shape_cast %23 : vector<1x8x128xf32> to vector<8x128xf32>
    %cst_12 = arith.constant dense<0.000000e+00> : vector<8x128xf32>
    %25 = tpu.matmul %17, %1, %cst_12 {dimension_numbers = #tpu.dot_dimension_numbers<[1], [0], [0], [1], [0, 0, 1, 1], [], []>} : vector<8x128xf32>, vector<128x128xf32>, vector<8x128xf32> -> vector<8x128xf32>
    %26 = arith.addf %24, %25 : vector<8x128xf32>
    %27 = math.tanh %26 : vector<8x128xf32>
    %c8_i32_13 = arith.constant 8 : i32
    %28 = arith.muli %c2_i32, %c8_i32_13 : i32
    %29 = tpu.assume_multiple %28, 8 : i32
    %30 = arith.index_cast %29 : i32 to index
    %c0_14 = arith.constant 0 : index
    %31 = vector.load %arg9[%30, %c0_14] : memref<64x128xf32, #tpu.memory_space<vmem>>, vector<8x128xf32>
    tpu.vector_store %arg9[%30, %c0_14], %27 {strides = array<i32>} : memref<64x128xf32, #tpu.memory_space<vmem>>, vector<8x128xf32>,
    %c3_i32 = arith.constant 3 : i32
    %32 = arith.index_cast %c3_i32 : i32 to index
    %c0_15 = arith.constant 0 : index
    %c0_16 = arith.constant 0 : index
    %33 = vector.load %arg1[%32, %c0_15, %c0_16] : memref<8x8x128xf32, #tpu.memory_space<vmem>>, vector<1x8x128xf32>
    %34 = vector.shape_cast %33 : vector<1x8x128xf32> to vector<8x128xf32>
    %cst_17 = arith.constant dense<0.000000e+00> : vector<8x128xf32>
    %35 = tpu.matmul %27, %1, %cst_17 {dimension_numbers = #tpu.dot_dimension_numbers<[1], [0], [0], [1], [0, 0, 1, 1], [], []>} : vector<8x128xf32>, vector<128x128xf32>, vector<8x128xf32> -> vector<8x128xf32>
    %36 = arith.addf %34, %35 : vector<8x128xf32>
    %37 = math.tanh %36 : vector<8x128xf32>
    %c8_i32_18 = arith.constant 8 : i32
    %38 = arith.muli %c3_i32, %c8_i32_18 : i32
    %39 = tpu.assume_multiple %38, 8 : i32
    %40 = arith.index_cast %39 : i32 to index
    %c0_19 = arith.constant 0 : index
    %41 = vector.load %arg9[%40, %c0_19] : memref<64x128xf32, #tpu.memory_space<vmem>>, vector<8x128xf32>
    tpu.vector_store %arg9[%40, %c0_19], %37 {strides = array<i32>} : memref<64x128xf32, #tpu.memory_space<vmem>>, vector<8x128xf32>,
    %c4_i32 = arith.constant 4 : i32
    %42 = arith.index_cast %c4_i32 : i32 to index
    %c0_20 = arith.constant 0 : index
    %c0_21 = arith.constant 0 : index
    %43 = vector.load %arg1[%42, %c0_20, %c0_21] : memref<8x8x128xf32, #tpu.memory_space<vmem>>, vector<1x8x128xf32>
    %44 = vector.shape_cast %43 : vector<1x8x128xf32> to vector<8x128xf32>
    %cst_22 = arith.constant dense<0.000000e+00> : vector<8x128xf32>
    %45 = tpu.matmul %37, %1, %cst_22 {dimension_numbers = #tpu.dot_dimension_numbers<[1], [0], [0], [1], [0, 0, 1, 1], [], []>} : vector<8x128xf32>, vector<128x128xf32>, vector<8x128xf32> -> vector<8x128xf32>
    %46 = arith.addf %44, %45 : vector<8x128xf32>
    %47 = math.tanh %46 : vector<8x128xf32>
    %c8_i32_23 = arith.constant 8 : i32
    %48 = arith.muli %c4_i32, %c8_i32_23 : i32
    %49 = tpu.assume_multiple %48, 8 : i32
    %50 = arith.index_cast %49 : i32 to index
    %c0_24 = arith.constant 0 : index
    %51 = vector.load %arg9[%50, %c0_24] : memref<64x128xf32, #tpu.memory_space<vmem>>, vector<8x128xf32>
    tpu.vector_store %arg9[%50, %c0_24], %47 {strides = array<i32>} : memref<64x128xf32, #tpu.memory_space<vmem>>, vector<8x128xf32>,
    %c5_i32 = arith.constant 5 : i32
    %52 = arith.index_cast %c5_i32 : i32 to index
    %c0_25 = arith.constant 0 : index
    %c0_26 = arith.constant 0 : index
    %53 = vector.load %arg1[%52, %c0_25, %c0_26] : memref<8x8x128xf32, #tpu.memory_space<vmem>>, vector<1x8x128xf32>
    %54 = vector.shape_cast %53 : vector<1x8x128xf32> to vector<8x128xf32>
    %cst_27 = arith.constant dense<0.000000e+00> : vector<8x128xf32>
    %55 = tpu.matmul %47, %1, %cst_27 {dimension_numbers = #tpu.dot_dimension_numbers<[1], [0], [0], [1], [0, 0, 1, 1], [], []>} : vector<8x128xf32>, vector<128x128xf32>, vector<8x128xf32> -> vector<8x128xf32>
    %56 = arith.addf %54, %55 : vector<8x128xf32>
    %57 = math.tanh %56 : vector<8x128xf32>
    %c8_i32_28 = arith.constant 8 : i32
    %58 = arith.muli %c5_i32, %c8_i32_28 : i32
    %59 = tpu.assume_multiple %58, 8 : i32
    %60 = arith.index_cast %59 : i32 to index
    %c0_29 = arith.constant 0 : index
    %61 = vector.load %arg9[%60, %c0_29] : memref<64x128xf32, #tpu.memory_space<vmem>>, vector<8x128xf32>
    tpu.vector_store %arg9[%60, %c0_29], %57 {strides = array<i32>} : memref<64x128xf32, #tpu.memory_space<vmem>>, vector<8x128xf32>,
    %c6_i32 = arith.constant 6 : i32
    %62 = arith.index_cast %c6_i32 : i32 to index
    %c0_30 = arith.constant 0 : index
    %c0_31 = arith.constant 0 : index
    %63 = vector.load %arg1[%62, %c0_30, %c0_31] : memref<8x8x128xf32, #tpu.memory_space<vmem>>, vector<1x8x128xf32>
    %64 = vector.shape_cast %63 : vector<1x8x128xf32> to vector<8x128xf32>
    %cst_32 = arith.constant dense<0.000000e+00> : vector<8x128xf32>
    %65 = tpu.matmul %57, %1, %cst_32 {dimension_numbers = #tpu.dot_dimension_numbers<[1], [0], [0], [1], [0, 0, 1, 1], [], []>} : vector<8x128xf32>, vector<128x128xf32>, vector<8x128xf32> -> vector<8x128xf32>
    %66 = arith.addf %64, %65 : vector<8x128xf32>
    %67 = math.tanh %66 : vector<8x128xf32>
    %c8_i32_33 = arith.constant 8 : i32
    %68 = arith.muli %c6_i32, %c8_i32_33 : i32
    %69 = tpu.assume_multiple %68, 8 : i32
    %70 = arith.index_cast %69 : i32 to index
    %c0_34 = arith.constant 0 : index
    %71 = vector.load %arg9[%70, %c0_34] : memref<64x128xf32, #tpu.memory_space<vmem>>, vector<8x128xf32>
    tpu.vector_store %arg9[%70, %c0_34], %67 {strides = array<i32>} : memref<64x128xf32, #tpu.memory_space<vmem>>, vector<8x128xf32>,
    %c7_i32 = arith.constant 7 : i32
    %72 = arith.index_cast %c7_i32 : i32 to index
    %c0_35 = arith.constant 0 : index
    %c0_36 = arith.constant 0 : index
    %73 = vector.load %arg1[%72, %c0_35, %c0_36] : memref<8x8x128xf32, #tpu.memory_space<vmem>>, vector<1x8x128xf32>
    %74 = vector.shape_cast %73 : vector<1x8x128xf32> to vector<8x128xf32>
    %cst_37 = arith.constant dense<0.000000e+00> : vector<8x128xf32>
    %75 = tpu.matmul %67, %1, %cst_37 {dimension_numbers = #tpu.dot_dimension_numbers<[1], [0], [0], [1], [0, 0, 1, 1], [], []>} : vector<8x128xf32>, vector<128x128xf32>, vector<8x128xf32> -> vector<8x128xf32>
    %76 = arith.addf %74, %75 : vector<8x128xf32>
    %77 = math.tanh %76 : vector<8x128xf32>
    %c8_i32_38 = arith.constant 8 : i32
    %78 = arith.muli %c7_i32, %c8_i32_38 : i32
    %79 = tpu.assume_multiple %78, 8 : i32
    %80 = arith.index_cast %79 : i32 to index
    %c0_39 = arith.constant 0 : index
    %81 = vector.load %arg9[%80, %c0_39] : memref<64x128xf32, #tpu.memory_space<vmem>>, vector<8x128xf32>
    tpu.vector_store %arg9[%80, %c0_39], %77 {strides = array<i32>} : memref<64x128xf32, #tpu.memory_space<vmem>>, vector<8x128xf32>,
    %c8_i32_40 = arith.constant 8 : i32
    %c0_41 = arith.constant 0 : index
    %c0_42 = arith.constant 0 : index
    %82 = vector.load %arg3[%c0_41, %c0_42] : memref<128x128xf32, #tpu.memory_space<vmem>>, vector<128x128xf32>
    %c0_43 = arith.constant 0 : index
    %c0_44 = arith.constant 0 : index
    %83 = vector.load %arg4[%c0_43, %c0_44] : memref<128x128xf32, #tpu.memory_space<vmem>>, vector<128x128xf32>
    %c0_45 = arith.constant 0 : index
    %c0_46 = arith.constant 0 : index
    %84 = vector.load %arg5[%c0_45, %c0_46] : memref<1x128xf32, #tpu.memory_space<vmem>>, vector<1x128xf32>
    %c0_i32_47 = arith.constant 0 : i32
    %c1_i32_48 = arith.constant 1 : i32
    %85 = arith.muli %c0_i32_47, %c1_i32_48 : i32
    %c0_i32_49 = arith.constant 0 : i32
    %86 = arith.addi %c0_i32_49, %85 : i32
    %c64_i32 = arith.constant 64 : i32
    %87 = arith.muli %86, %c64_i32 : i32
    %88 = tpu.assume_multiple %87, 64 : i32
    %89 = arith.index_cast %88 : i32 to index
    %c0_50 = arith.constant 0 : index
    %90 = vector.load %arg9[%89, %c0_50] : memref<64x128xf32, #tpu.memory_space<vmem>>, vector<64x128xf32>
    %cst_51 = arith.constant dense<0.000000e+00> : vector<64x128xf32>
    %91 = tpu.matmul %90, %82, %cst_51 {dimension_numbers = #tpu.dot_dimension_numbers<[1], [0], [0], [1], [0, 0, 1, 1], [], []>} : vector<64x128xf32>, vector<128x128xf32>, vector<64x128xf32> -> vector<64x128xf32>
    %92 = vector.broadcast %84 : vector<1x128xf32> to vector<64x128xf32>
    %93 = arith.addf %91, %92 : vector<64x128xf32>
    %94 = arith.index_cast %88 : i32 to index
    %c0_52 = arith.constant 0 : index
    %95 = vector.load %arg10[%94, %c0_52] : memref<64x128xf32, #tpu.memory_space<vmem>>, vector<64x128xf32>
    tpu.vector_store %arg10[%94, %c0_52], %93 {strides = array<i32>} : memref<64x128xf32, #tpu.memory_space<vmem>>, vector<64x128xf32>,
    %c1_i32_53 = arith.constant 1 : i32
    %c0_i32_54 = arith.constant 0 : i32
    %c8_i32_55 = arith.constant 8 : i32
    %96 = arith.muli %c0_i32_54, %c8_i32_55 : i32
    %97 = tpu.assume_multiple %96, 8 : i32
    %98 = arith.index_cast %97 : i32 to index
    %c0_56 = arith.constant 0 : index
    %99 = vector.load %arg10[%98, %c0_56] : memref<64x128xf32, #tpu.memory_space<vmem>>, vector<8x128xf32>
    %cst_57 = arith.constant dense<0.000000e+00> : vector<8x128xf32>
    %100 = tpu.matmul %0, %83, %cst_57 {dimension_numbers = #tpu.dot_dimension_numbers<[1], [0], [0], [1], [0, 0, 1, 1], [], []>} : vector<8x128xf32>, vector<128x128xf32>, vector<8x128xf32> -> vector<8x128xf32>
    %101 = arith.addf %99, %100 : vector<8x128xf32>
    %102 = math.tanh %101 : vector<8x128xf32>
    %c1_i32_58 = arith.constant 1 : i32
    %c8_i32_59 = arith.constant 8 : i32
    %103 = arith.muli %c1_i32_58, %c8_i32_59 : i32
    %104 = tpu.assume_multiple %103, 8 : i32
    %105 = arith.index_cast %104 : i32 to index
    %c0_60 = arith.constant 0 : index
    %106 = vector.load %arg10[%105, %c0_60] : memref<64x128xf32, #tpu.memory_space<vmem>>, vector<8x128xf32>
    %cst_61 = arith.constant dense<0.000000e+00> : vector<8x128xf32>
    %107 = tpu.matmul %102, %83, %cst_61 {dimension_numbers = #tpu.dot_dimension_numbers<[1], [0], [0], [1], [0, 0, 1, 1], [], []>} : vector<8x128xf32>, vector<128x128xf32>, vector<8x128xf32> -> vector<8x128xf32>
    %108 = arith.addf %106, %107 : vector<8x128xf32>
    %109 = math.tanh %108 : vector<8x128xf32>
    %c2_i32_62 = arith.constant 2 : i32
    %c8_i32_63 = arith.constant 8 : i32
    %110 = arith.muli %c2_i32_62, %c8_i32_63 : i32
    %111 = tpu.assume_multiple %110, 8 : i32
    %112 = arith.index_cast %111 : i32 to index
    %c0_64 = arith.constant 0 : index
    %113 = vector.load %arg10[%112, %c0_64] : memref<64x128xf32, #tpu.memory_space<vmem>>, vector<8x128xf32>
    %cst_65 = arith.constant dense<0.000000e+00> : vector<8x128xf32>
    %114 = tpu.matmul %109, %83, %cst_65 {dimension_numbers = #tpu.dot_dimension_numbers<[1], [0], [0], [1], [0, 0, 1, 1], [], []>} : vector<8x128xf32>, vector<128x128xf32>, vector<8x128xf32> -> vector<8x128xf32>
    %115 = arith.addf %113, %114 : vector<8x128xf32>
    %116 = math.tanh %115 : vector<8x128xf32>
    %c3_i32_66 = arith.constant 3 : i32
    %c8_i32_67 = arith.constant 8 : i32
    %117 = arith.muli %c3_i32_66, %c8_i32_67 : i32
    %118 = tpu.assume_multiple %117, 8 : i32
    %119 = arith.index_cast %118 : i32 to index
    %c0_68 = arith.constant 0 : index
    %120 = vector.load %arg10[%119, %c0_68] : memref<64x128xf32, #tpu.memory_space<vmem>>, vector<8x128xf32>
    %cst_69 = arith.constant dense<0.000000e+00> : vector<8x128xf32>
    %121 = tpu.matmul %116, %83, %cst_69 {dimension_numbers = #tpu.dot_dimension_numbers<[1], [0], [0], [1], [0, 0, 1, 1], [], []>} : vector<8x128xf32>, vector<128x128xf32>, vector<8x128xf32> -> vector<8x128xf32>
    %122 = arith.addf %120, %121 : vector<8x128xf32>
    %123 = math.tanh %122 : vector<8x128xf32>
    %c4_i32_70 = arith.constant 4 : i32
    %c8_i32_71 = arith.constant 8 : i32
    %124 = arith.muli %c4_i32_70, %c8_i32_71 : i32
    %125 = tpu.assume_multiple %124, 8 : i32
    %126 = arith.index_cast %125 : i32 to index
    %c0_72 = arith.constant 0 : index
    %127 = vector.load %arg10[%126, %c0_72] : memref<64x128xf32, #tpu.memory_space<vmem>>, vector<8x128xf32>
    %cst_73 = arith.constant dense<0.000000e+00> : vector<8x128xf32>
    %128 = tpu.matmul %123, %83, %cst_73 {dimension_numbers = #tpu.dot_dimension_numbers<[1], [0], [0], [1], [0, 0, 1, 1], [], []>} : vector<8x128xf32>, vector<128x128xf32>, vector<8x128xf32> -> vector<8x128xf32>
    %129 = arith.addf %127, %128 : vector<8x128xf32>
    %130 = math.tanh %129 : vector<8x128xf32>
    %c5_i32_74 = arith.constant 5 : i32
    %c8_i32_75 = arith.constant 8 : i32
    %131 = arith.muli %c5_i32_74, %c8_i32_75 : i32
    %132 = tpu.assume_multiple %131, 8 : i32
    %133 = arith.index_cast %132 : i32 to index
    %c0_76 = arith.constant 0 : index
    %134 = vector.load %arg10[%133, %c0_76] : memref<64x128xf32, #tpu.memory_space<vmem>>, vector<8x128xf32>
    %cst_77 = arith.constant dense<0.000000e+00> : vector<8x128xf32>
    %135 = tpu.matmul %130, %83, %cst_77 {dimension_numbers = #tpu.dot_dimension_numbers<[1], [0], [0], [1], [0, 0, 1, 1], [], []>} : vector<8x128xf32>, vector<128x128xf32>, vector<8x128xf32> -> vector<8x128xf32>
    %136 = arith.addf %134, %135 : vector<8x128xf32>
    %137 = math.tanh %136 : vector<8x128xf32>
    %c6_i32_78 = arith.constant 6 : i32
    %c8_i32_79 = arith.constant 8 : i32
    %138 = arith.muli %c6_i32_78, %c8_i32_79 : i32
    %139 = tpu.assume_multiple %138, 8 : i32
    %140 = arith.index_cast %139 : i32 to index
    %c0_80 = arith.constant 0 : index
    %141 = vector.load %arg10[%140, %c0_80] : memref<64x128xf32, #tpu.memory_space<vmem>>, vector<8x128xf32>
    %cst_81 = arith.constant dense<0.000000e+00> : vector<8x128xf32>
    %142 = tpu.matmul %137, %83, %cst_81 {dimension_numbers = #tpu.dot_dimension_numbers<[1], [0], [0], [1], [0, 0, 1, 1], [], []>} : vector<8x128xf32>, vector<128x128xf32>, vector<8x128xf32> -> vector<8x128xf32>
    %143 = arith.addf %141, %142 : vector<8x128xf32>
    %144 = math.tanh %143 : vector<8x128xf32>
    %c7_i32_82 = arith.constant 7 : i32
    %c8_i32_83 = arith.constant 8 : i32
    %145 = arith.muli %c7_i32_82, %c8_i32_83 : i32
    %146 = tpu.assume_multiple %145, 8 : i32
    %147 = arith.index_cast %146 : i32 to index
    %c0_84 = arith.constant 0 : index
    %148 = vector.load %arg10[%147, %c0_84] : memref<64x128xf32, #tpu.memory_space<vmem>>, vector<8x128xf32>
    %cst_85 = arith.constant dense<0.000000e+00> : vector<8x128xf32>
    %149 = tpu.matmul %144, %83, %cst_85 {dimension_numbers = #tpu.dot_dimension_numbers<[1], [0], [0], [1], [0, 0, 1, 1], [], []>} : vector<8x128xf32>, vector<128x128xf32>, vector<8x128xf32> -> vector<8x128xf32>
    %150 = arith.addf %148, %149 : vector<8x128xf32>
    %151 = math.tanh %150 : vector<8x128xf32>
    %c8_i32_86 = arith.constant 8 : i32
    %c0_87 = arith.constant 0 : index
    %c0_88 = arith.constant 0 : index
    %152 = vector.load %arg6[%c0_87, %c0_88] : memref<128x128xf32, #tpu.memory_space<vmem>>, vector<128x128xf32>
    %c0_89 = arith.constant 0 : index
    %c0_90 = arith.constant 0 : index
    %153 = vector.load %arg7[%c0_89, %c0_90] : memref<1x128xf32, #tpu.memory_space<vmem>>, vector<1x128xf32>
    %cst_91 = arith.constant dense<0.000000e+00> : vector<8x128xf32>
    %154 = tpu.matmul %151, %152, %cst_91 {dimension_numbers = #tpu.dot_dimension_numbers<[1], [0], [0], [1], [0, 0, 1, 1], [], []>} : vector<8x128xf32>, vector<128x128xf32>, vector<8x128xf32> -> vector<8x128xf32>
    %155 = vector.broadcast %153 : vector<1x128xf32> to vector<8x128xf32>
    %156 = arith.addf %154, %155 : vector<8x128xf32>
    %c0_92 = arith.constant 0 : index
    %c0_93 = arith.constant 0 : index
    %157 = vector.load %arg8[%c0_92, %c0_93] : memref<8x128xf32, #tpu.memory_space<vmem>>, vector<8x128xf32>
    tpu.vector_store %arg8[%c0_92, %c0_93], %156 {strides = array<i32>} : memref<8x128xf32, #tpu.memory_space<vmem>>, vector<8x128xf32>,
    return
  }
  func.func @transform_0(%arg0: i32) -> (i32, i32, i32) {
    %c0_i32 = arith.constant 0 : i32
    %c0_i32_0 = arith.constant 0 : i32
    %c0_i32_1 = arith.constant 0 : i32
    return %c0_i32, %arg0, %c0_i32_0 : i32, i32, i32
  }
  func.func @transform_1(%arg0: i32) -> (i32, i32) {
    %c0_i32 = arith.constant 0 : i32
    %c0_i32_0 = arith.constant 0 : i32
    %c0_i32_1 = arith.constant 0 : i32
    return %c0_i32, %c0_i32_0 : i32, i32
  }
  func.func @transform_2(%arg0: i32) -> (i32, i32) {
    %c0_i32 = arith.constant 0 : i32
    %c0_i32_0 = arith.constant 0 : i32
    %c0_i32_1 = arith.constant 0 : i32
    return %c0_i32, %c0_i32_0 : i32, i32
  }
  func.func @transform_3(%arg0: i32) -> (i32, i32) {
    %c0_i32 = arith.constant 0 : i32
    %c0_i32_0 = arith.constant 0 : i32
    %c0_i32_1 = arith.constant 0 : i32
    return %c0_i32, %c0_i32_0 : i32, i32
  }
  func.func @transform_4(%arg0: i32) -> (i32, i32) {
    %c0_i32 = arith.constant 0 : i32
    %c0_i32_0 = arith.constant 0 : i32
    %c0_i32_1 = arith.constant 0 : i32
    return %c0_i32, %c0_i32_0 : i32, i32
  }
  func.func @transform_5(%arg0: i32) -> (i32, i32) {
    %c0_i32 = arith.constant 0 : i32
    %c0_i32_0 = arith.constant 0 : i32
    %c0_i32_1 = arith.constant 0 : i32
    return %c0_i32, %c0_i32_0 : i32, i32
  }
  func.func @transform_6(%arg0: i32) -> (i32, i32) {
    %c0_i32 = arith.constant 0 : i32
    %c0_i32_0 = arith.constant 0 : i32
    %c0_i32_1 = arith.constant 0 : i32
    return %c0_i32, %c0_i32_0 : i32, i32
  }
  func.func @transform_7(%arg0: i32) -> (i32, i32) {
    %c0_i32 = arith.constant 0 : i32
    %c0_i32_0 = arith.constant 0 : i32
    return %arg0, %c0_i32 : i32, i32
  }
}

</mosaic_0001>

<llo_original>
// kernel: _lambda_.1
$region0: #{_lambda_.1}
  #allocation0 [shape = 'u32[]', space=smem, size = 0x4, offset = 0x4, fixed_abs, tag = 'smem constant byte address 0x4 - core index']
  #allocation1 [shape = 'u32[144,128]{1,0:T(1,128)}', space=vmem, size = 0x12000, scoped, tag = 'internal scratch']
  #allocation2 [shape = 'f32[64,128]{1,0:T(8,128)}', space=vmem, size = 0x8000, scoped, tag = 'scratch operand']
  #allocation3 [shape = 'f32[64,128]{1,0:T(8,128)}', space=vmem, size = 0x8000, scoped, tag = 'scratch operand']
  %s0 = inlined_call_operand.vmem [shape: f32[8,8,128], index: 0, kind: input, shape index: {}]
  %s1 = inlined_call_operand.hbm [shape: f32[128,128], index: 1, kind: input, shape index: {}]
  %s2 = inlined_call_operand.hbm [shape: f32[128,128], index: 2, kind: input, shape index: {}]
  %s3 = inlined_call_operand.hbm [shape: f32[128,128], index: 3, kind: input, shape index: {}]
  %s4 = inlined_call_operand.vmem [shape: f32[1,128], index: 4, kind: input, shape index: {}]
  %s5 = inlined_call_operand.vmem [shape: f32[128,128], index: 5, kind: input, shape index: {}]
  %s6 = inlined_call_operand.vmem [shape: f32[1,128], index: 6, kind: input, shape index: {}]
  %s7 = inlined_call_operand.vmem [shape: f32[8,128], index: 7, kind: output, shape index: {}]
  %s8 = sld [smem:[#allocation0]]
  $region50: #{_lambda_.1} parent=0
    _
  %s10 = ssub.s32 1, %s8
  %s11 = scalar_select 0, %s10, %s8
  $region1: #{_lambda_.1} parent=0
    #allocation4 [shape = 'u8[65536]{0}', space=vmem, size = 0x10000, scoped, tag = 'input window, operand 1, single buffered']
    #allocation5 [shape = 's32[1]{0}', space=sflag, size = 0x4, scoped, tag = 'scoped memory for _lambda_.1']
    #allocation6 [shape = 'u8[65536]{0}', space=vmem, size = 0x10000, scoped, tag = 'input window, operand 2, single buffered']
    #allocation7 [shape = 's32[1]{0}', space=sflag, size = 0x4, scoped, tag = 'scoped memory for _lambda_.1']
    #allocation8 [shape = 'u8[65536]{0}', space=vmem, size = 0x10000, scoped, tag = 'input window, operand 3, single buffered']
    %12 = vsyncpa [#allocation5], 0
    %13 = vsyncpa [#allocation7], 0
    // Predicated region
    $region2: #{_lambda_.1} parent=1 // pred_check
      _
    $region3: #{_lambda_.1} parent=1 // pred_check_branch
      %15 = sbr.rel (0) target = $region5
    $region4: #{_lambda_.1} parent=1 // pred_region
      _
    $region5: #{_lambda_.1} parent=1 // pred_fallthru
      _
    // Predicated region
    $region6: #{_lambda_.1} parent=1 // pred_check
      _
    $region7: #{_lambda_.1} parent=1 // pred_check_branch
      %17 = sbr.rel (0) target = $region9
    $region8: #{_lambda_.1} parent=1 // pred_region
      %s19 = ssub.s32 2048, 2048
      %20 = vsyncadd [#allocation5], %s19
      %s21 = sshll.u32 [#allocation4], 4
      %s22 = int_to_ptr.vmem [resolvable:$true] %s21
      %27 = dma.hbm_to_vmem [thread:$0]  %s1, 2048, %s22, [#allocation5], 128, 128, 8
    $region9: #{_lambda_.1} parent=1 // pred_fallthru
      _
    // Predicated region
    $region10: #{_lambda_.1} parent=1 // pred_check
      _
    $region11: #{_lambda_.1} parent=1 // pred_check_branch
      %29 = sbr.rel (0) target = $region13
    $region12: #{_lambda_.1} parent=1 // pred_region
      %s31 = ssub.s32 2048, 2048
      %32 = vsyncadd [#allocation7], %s31
      %s33 = sshll.u32 [#allocation6], 4
      %s34 = int_to_ptr.vmem [resolvable:$true] %s33
      %39 = dma.hbm_to_vmem [thread:$0]  %s2, 2048, %s34, [#allocation7], 128, 128, 8
    $region13: #{_lambda_.1} parent=1 // pred_fallthru
      _
    // Predicated region
    $region14: #{_lambda_.1} parent=1 // pred_check
      _
    $region15: #{_lambda_.1} parent=1 // pred_check_branch
      %41 = sbr.rel (0) target = $region17
    $region16: #{_lambda_.1} parent=1 // pred_region
      %s43 = ssub.s32 2048, 2048
      %44 = vsyncadd [#allocation7], %s43
      %s45 = sshll.u32 [#allocation8], 4
      %s46 = int_to_ptr.vmem [resolvable:$true] %s45
      %51 = dma.hbm_to_vmem [thread:$0]  %s3, 2048, %s46, [#allocation7], 128, 128, 8
    $region17: #{_lambda_.1} parent=1 // pred_fallthru
      _
    // Predicated region
    $region18: #{_lambda_.1} parent=1 // pred_check
      _
    $region19: #{_lambda_.1} parent=1 // pred_check_branch
      %53 = sbr.rel (0) target = $region21
    $region20: #{_lambda_.1} parent=1 // pred_region
      _
    $region21: #{_lambda_.1} parent=1 // pred_fallthru
      _
    // Predicated region
    $region22: #{_lambda_.1} parent=1 // pred_check
      _
    $region23: #{_lambda_.1} parent=1 // pred_check_branch
      %55 = sbr.rel (0) target = $region25
    $region24: #{_lambda_.1} parent=1 // pred_region
      _
    $region25: #{_lambda_.1} parent=1 // pred_fallthru
      _
    // Predicated region
    $region26: #{_lambda_.1} parent=1 // pred_check
      _
    $region27: #{_lambda_.1} parent=1 // pred_check_branch
      %57 = sbr.rel (0) target = $region29
    $region28: #{_lambda_.1} parent=1 // pred_region
      _
    $region29: #{_lambda_.1} parent=1 // pred_fallthru
      _
    // Predicated region
    $region30: #{_lambda_.1} parent=1 // pred_check
      _
    $region31: #{_lambda_.1} parent=1 // pred_check_branch
      %59 = sbr.rel (0) target = $region33
    $region32: #{_lambda_.1} parent=1 // pred_region
      %60 = dma.done [#allocation5], 2048
    $region33: #{_lambda_.1} parent=1 // pred_fallthru
      _
    // Predicated region
    $region34: #{_lambda_.1} parent=1 // pred_check
      _
    $region35: #{_lambda_.1} parent=1 // pred_check_branch
      %62 = sbr.rel (0) target = $region37
    $region36: #{_lambda_.1} parent=1 // pred_region
      %63 = dma.done [#allocation7], 2048
    $region37: #{_lambda_.1} parent=1 // pred_fallthru
      _
    // Predicated region
    $region38: #{_lambda_.1} parent=1 // pred_check
      _
    $region39: #{_lambda_.1} parent=1 // pred_check_branch
      %65 = sbr.rel (0) target = $region41
    $region40: #{_lambda_.1} parent=1 // pred_region
      %66 = dma.done [#allocation7], 2048
    $region41: #{_lambda_.1} parent=1 // pred_fallthru
      _
    %v67 = vld [vmem:[#allocation4] sm:$0xff]
    %v68 = vld [vmem:[#allocation4 + $0x8] sm:$0xff]
    %v69 = vld [vmem:[#allocation4 + $0x10] sm:$0xff]
    %v70 = vld [vmem:[#allocation4 + $0x18] sm:$0xff]
    %v71 = vld [vmem:[#allocation4 + $0x20] sm:$0xff]
    %v72 = vld [vmem:[#allocation4 + $0x28] sm:$0xff]
    %v73 = vld [vmem:[#allocation4 + $0x30] sm:$0xff]
    %v74 = vld [vmem:[#allocation4 + $0x38] sm:$0xff]
    %v75 = vld [vmem:[#allocation4 + $0x40] sm:$0xff]
    %v76 = vld [vmem:[#allocation4 + $0x48] sm:$0xff]
    %v77 = vld [vmem:[#allocation4 + $0x50] sm:$0xff]
    %v78 = vld [vmem:[#allocation4 + $0x58] sm:$0xff]
    %v79 = vld [vmem:[#allocation4 + $0x60] sm:$0xff]
    %v80 = vld [vmem:[#allocation4 + $0x68] sm:$0xff]
    %v81 = vld [vmem:[#allocation4 + $0x70] sm:$0xff]
    %v82 = vld [vmem:[#allocation4 + $0x78] sm:$0xff]
    %v83 = vld [vmem:[%s0] sm:$0xff]
    %84 = vmatprep.subr.mxu0 0.0
    %85 = vmatpush1.msra.mxu0 %v67
    %86 = vmatprep.subr.mxu0 0.0
    %87 = vmatpush1.msra.mxu0 %v68
    %88 = vmatprep.subr.mxu0 0.0
    %89 = vmatpush1.msra.mxu0 %v69
    %90 = vmatprep.subr.mxu0 0.0
    %91 = vmatpush1.msra.mxu0 %v70
    %92 = vmatprep.subr.mxu0 0.0
    %93 = vmatpush1.msra.mxu0 %v71
    %94 = vmatprep.subr.mxu0 0.0
    %95 = vmatpush1.msra.mxu0 %v72
    %96 = vmatprep.subr.mxu0 0.0
    %97 = vmatpush1.msra.mxu0 %v73
    %98 = vmatprep.subr.mxu0 0.0
    %99 = vmatpush1.msra.mxu0 %v74
    %100 = vmatprep.subr.mxu0 0.0
    %101 = vmatpush1.msra.mxu0 %v75
    %102 = vmatprep.subr.mxu0 0.0
    %103 = vmatpush1.msra.mxu0 %v76
    %104 = vmatprep.subr.mxu0 0.0
    %105 = vmatpush1.msra.mxu0 %v77
    %106 = vmatprep.subr.mxu0 0.0
    %107 = vmatpush1.msra.mxu0 %v78
    %108 = vmatprep.subr.mxu0 0.0
    %109 = vmatpush1.msra.mxu0 %v79
    %110 = vmatprep.subr.mxu0 0.0
    %111 = vmatpush1.msra.mxu0 %v80
    %112 = vmatprep.subr.mxu0 0.0
    %113 = vmatpush1.msra.mxu0 %v81
    %114 = vmatprep.subr.mxu0 0.0
    %115 = vmatpush1.msra.mxu0 %v82
    %116 = vmatprep.subr.mxu0 0.0
    %117 = vmatpush1.msra.mxu0 0.0
    %118 = vmatprep.subr.mxu0 0.0
    %119 = vmatpush1.msra.mxu0 0.0
    %120 = vmatprep.subr.mxu0 0.0
    %121 = vmatpush1.msra.mxu0 0.0
    %122 = vmatprep.subr.mxu0 0.0
    %123 = vmatpush1.msra.mxu0 0.0
    %124 = vmatprep.subr.mxu0 0.0
    %125 = vmatpush1.msra.mxu0 0.0
    %126 = vmatprep.subr.mxu0 0.0
    %127 = vmatpush1.msra.mxu0 0.0
    %128 = vmatprep.subr.mxu0 0.0
    %129 = vmatpush1.msra.mxu0 0.0
    %130 = vmatprep.subr.mxu0 0.0
    %131 = vmatpush1.msra.mxu0 0.0
    %132 = vmatprep.subr.mxu0 0.0
    %133 = vmatpush1.msra.mxu0 0.0
    %134 = vmatprep.subr.mxu0 0.0
    %135 = vmatpush1.msra.mxu0 0.0
    %136 = vmatprep.subr.mxu0 0.0
    %137 = vmatpush1.msra.mxu0 0.0
    %138 = vmatprep.subr.mxu0 0.0
    %139 = vmatpush1.msra.mxu0 0.0
    %140 = vmatprep.subr.mxu0 0.0
    %141 = vmatpush1.msra.mxu0 0.0
    %142 = vmatprep.subr.mxu0 0.0
    %143 = vmatpush1.msra.mxu0 0.0
    %144 = vmatprep.subr.mxu0 0.0
    %145 = vmatpush1.msra.mxu0 0.0
    %146 = vmatprep.subr.mxu0 0.0
    %147 = vmatpush1.msra.mxu0 0.0
    %148 = vmatprep.mubr.f32.mxu0 0.0
    %149 = vmatmul.mubr.f32.gmra.mrb[0].mxu0 0.0
    %v150 = vpop.f32.mrb[0].mxu0
    %v151 = vadd.f32 0.0, %v150
    %v152 = vpop.f32.mrb[0].mxu0
    %153 = vdwg.mxu0
    %v154 = vadd.f32 %v83, %v151
    %v155 = vtanh.pop %v154
    %156 = vst [vmem:[#allocation2] sm:$0xff] %v155
    %s157 = scalar_lea.vmem %s0, 8
    %v158 = vld [vmem:[%s157] sm:$0xff]
    %159 = vmatprep.subr.mxu0 0.0
    %160 = vmatpush1.msra.mxu0 %v67
    %161 = vmatprep.subr.mxu0 0.0
    %162 = vmatpush1.msra.mxu0 %v68
    %163 = vmatprep.subr.mxu0 0.0
    %164 = vmatpush1.msra.mxu0 %v69
    %165 = vmatprep.subr.mxu0 0.0
    %166 = vmatpush1.msra.mxu0 %v70
    %167 = vmatprep.subr.mxu0 0.0
    %168 = vmatpush1.msra.mxu0 %v71
    %169 = vmatprep.subr.mxu0 0.0
    %170 = vmatpush1.msra.mxu0 %v72
    %171 = vmatprep.subr.mxu0 0.0
    %172 = vmatpush1.msra.mxu0 %v73
    %173 = vmatprep.subr.mxu0 0.0
    %174 = vmatpush1.msra.mxu0 %v74
    %175 = vmatprep.subr.mxu0 0.0
    %176 = vmatpush1.msra.mxu0 %v75
    %177 = vmatprep.subr.mxu0 0.0
    %178 = vmatpush1.msra.mxu0 %v76
    %179 = vmatprep.subr.mxu0 0.0
    %180 = vmatpush1.msra.mxu0 %v77
    %181 = vmatprep.subr.mxu0 0.0
    %182 = vmatpush1.msra.mxu0 %v78
    %183 = vmatprep.subr.mxu0 0.0
    %184 = vmatpush1.msra.mxu0 %v79
    %185 = vmatprep.subr.mxu0 0.0
    %186 = vmatpush1.msra.mxu0 %v80
    %187 = vmatprep.subr.mxu0 0.0
    %188 = vmatpush1.msra.mxu0 %v81
    %189 = vmatprep.subr.mxu0 0.0
    %190 = vmatpush1.msra.mxu0 %v82
    %191 = vmatprep.subr.mxu0 0.0
    %192 = vmatpush1.msra.mxu0 0.0
    %193 = vmatprep.subr.mxu0 0.0
    %194 = vmatpush1.msra.mxu0 0.0
    %195 = vmatprep.subr.mxu0 0.0
    %196 = vmatpush1.msra.mxu0 0.0
    %197 = vmatprep.subr.mxu0 0.0
    %198 = vmatpush1.msra.mxu0 0.0
    %199 = vmatprep.subr.mxu0 0.0
    %200 = vmatpush1.msra.mxu0 0.0
    %201 = vmatprep.subr.mxu0 0.0
    %202 = vmatpush1.msra.mxu0 0.0
    %203 = vmatprep.subr.mxu0 0.0
    %204 = vmatpush1.msra.mxu0 0.0
    %205 = vmatprep.subr.mxu0 0.0
    %206 = vmatpush1.msra.mxu0 0.0
    %207 = vmatprep.subr.mxu0 0.0
    %208 = vmatpush1.msra.mxu0 0.0
    %209 = vmatprep.subr.mxu0 0.0
    %210 = vmatpush1.msra.mxu0 0.0
    %211 = vmatprep.subr.mxu0 0.0
    %212 = vmatpush1.msra.mxu0 0.0
    %213 = vmatprep.subr.mxu0 0.0
    %214 = vmatpush1.msra.mxu0 0.0
    %215 = vmatprep.subr.mxu0 0.0
    %216 = vmatpush1.msra.mxu0 0.0
    %217 = vmatprep.subr.mxu0 0.0
    %218 = vmatpush1.msra.mxu0 0.0
    %219 = vmatprep.subr.mxu0 0.0
    %220 = vmatpush1.msra.mxu0 0.0
    %221 = vmatprep.subr.mxu0 0.0
    %222 = vmatpush1.msra.mxu0 0.0
    %223 = vmatprep.mubr.f32.mxu0 0.0
    %224 = vmatmul.mubr.f32.gmra.mrb[0].mxu0 %v155
    %v225 = vpop.f32.mrb[0].mxu0
    %v226 = vadd.f32 0.0, %v225
    %v227 = vpop.f32.mrb[0].mxu0
    %228 = vdwg.mxu0
    %v229 = vadd.f32 %v158, %v226
    %v230 = vtanh.pop %v229
    %s231 = scalar_lea.vmem [#allocation2], 8
    %232 = vst [vmem:[%s231] sm:$0xff] %v230
    %s233 = scalar_lea.vmem %s0, 16
    %v234 = vld [vmem:[%s233] sm:$0xff]
    %235 = vmatprep.subr.mxu0 0.0
    %236 = vmatpush1.msra.mxu0 %v67
    %237 = vmatprep.subr.mxu0 0.0
    %238 = vmatpush1.msra.mxu0 %v68
    %239 = vmatprep.subr.mxu0 0.0
    %240 = vmatpush1.msra.mxu0 %v69
    %241 = vmatprep.subr.mxu0 0.0
    %242 = vmatpush1.msra.mxu0 %v70
    %243 = vmatprep.subr.mxu0 0.0
    %244 = vmatpush1.msra.mxu0 %v71
    %245 = vmatprep.subr.mxu0 0.0
    %246 = vmatpush1.msra.mxu0 %v72
    %247 = vmatprep.subr.mxu0 0.0
    %248 = vmatpush1.msra.mxu0 %v73
    %249 = vmatprep.subr.mxu0 0.0
    %250 = vmatpush1.msra.mxu0 %v74
    %251 = vmatprep.subr.mxu0 0.0
    %252 = vmatpush1.msra.mxu0 %v75
    %253 = vmatprep.subr.mxu0 0.0
    %254 = vmatpush1.msra.mxu0 %v76
    %255 = vmatprep.subr.mxu0 0.0
    %256 = vmatpush1.msra.mxu0 %v77
    %257 = vmatprep.subr.mxu0 0.0
    %258 = vmatpush1.msra.mxu0 %v78
    %259 = vmatprep.subr.mxu0 0.0
    %260 = vmatpush1.msra.mxu0 %v79
    %261 = vmatprep.subr.mxu0 0.0
    %262 = vmatpush1.msra.mxu0 %v80
    %263 = vmatprep.subr.mxu0 0.0
    %264 = vmatpush1.msra.mxu0 %v81
    %265 = vmatprep.subr.mxu0 0.0
    %266 = vmatpush1.msra.mxu0 %v82
    %267 = vmatprep.subr.mxu0 0.0
    %268 = vmatpush1.msra.mxu0 0.0
    %269 = vmatprep.subr.mxu0 0.0
    %270 = vmatpush1.msra.mxu0 0.0
    %271 = vmatprep.subr.mxu0 0.0
    %272 = vmatpush1.msra.mxu0 0.0
    %273 = vmatprep.subr.mxu0 0.0
    %274 = vmatpush1.msra.mxu0 0.0
    %275 = vmatprep.subr.mxu0 0.0
    %276 = vmatpush1.msra.mxu0 0.0
    %277 = vmatprep.subr.mxu0 0.0
    %278 = vmatpush1.msra.mxu0 0.0
    %279 = vmatprep.subr.mxu0 0.0
    %280 = vmatpush1.msra.mxu0 0.0
    %281 = vmatprep.subr.mxu0 0.0
    %282 = vmatpush1.msra.mxu0 0.0
    %283 = vmatprep.subr.mxu0 0.0
    %284 = vmatpush1.msra.mxu0 0.0
    %285 = vmatprep.subr.mxu0 0.0
    %286 = vmatpush1.msra.mxu0 0.0
    %287 = vmatprep.subr.mxu0 0.0
    %288 = vmatpush1.msra.mxu0 0.0
    %289 = vmatprep.subr.mxu0 0.0
    %290 = vmatpush1.msra.mxu0 0.0
    %291 = vmatprep.subr.mxu0 0.0
    %292 = vmatpush1.msra.mxu0 0.0
    %293 = vmatprep.subr.mxu0 0.0
    %294 = vmatpush1.msra.mxu0 0.0
    %295 = vmatprep.subr.mxu0 0.0
    %296 = vmatpush1.msra.mxu0 0.0
    %297 = vmatprep.subr.mxu0 0.0
    %298 = vmatpush1.msra.mxu0 0.0
    %299 = vmatprep.mubr.f32.mxu0 0.0
    %300 = vmatmul.mubr.f32.gmra.mrb[0].mxu0 %v230
    %v301 = vpop.f32.mrb[0].mxu0
    %v302 = vadd.f32 0.0, %v301
    %v303 = vpop.f32.mrb[0].mxu0
    %304 = vdwg.mxu0
    %v305 = vadd.f32 %v234, %v302
    %v306 = vtanh.pop %v305
    %s307 = scalar_lea.vmem [#allocation2], 16
    %308 = vst [vmem:[%s307] sm:$0xff] %v306
    %s309 = scalar_lea.vmem %s0, 24
    %v310 = vld [vmem:[%s309] sm:$0xff]
    %311 = vmatprep.subr.mxu0 0.0
    %312 = vmatpush1.msra.mxu0 %v67
    %313 = vmatprep.subr.mxu0 0.0
    %314 = vmatpush1.msra.mxu0 %v68
    %315 = vmatprep.subr.mxu0 0.0
    %316 = vmatpush1.msra.mxu0 %v69
    %317 = vmatprep.subr.mxu0 0.0
    %318 = vmatpush1.msra.mxu0 %v70
    %319 = vmatprep.subr.mxu0 0.0
    %320 = vmatpush1.msra.mxu0 %v71
    %321 = vmatprep.subr.mxu0 0.0
    %322 = vmatpush1.msra.mxu0 %v72
    %323 = vmatprep.subr.mxu0 0.0
    %324 = vmatpush1.msra.mxu0 %v73
    %325 = vmatprep.subr.mxu0 0.0
    %326 = vmatpush1.msra.mxu0 %v74
    %327 = vmatprep.subr.mxu0 0.0
    %328 = vmatpush1.msra.mxu0 %v75
    %329 = vmatprep.subr.mxu0 0.0
    %330 = vmatpush1.msra.mxu0 %v76
    %331 = vmatprep.subr.mxu0 0.0
    %332 = vmatpush1.msra.mxu0 %v77
    %333 = vmatprep.subr.mxu0 0.0
    %334 = vmatpush1.msra.mxu0 %v78
    %335 = vmatprep.subr.mxu0 0.0
    %336 = vmatpush1.msra.mxu0 %v79
    %337 = vmatprep.subr.mxu0 0.0
    %338 = vmatpush1.msra.mxu0 %v80
    %339 = vmatprep.subr.mxu0 0.0
    %340 = vmatpush1.msra.mxu0 %v81
    %341 = vmatprep.subr.mxu0 0.0
    %342 = vmatpush1.msra.mxu0 %v82
    %343 = vmatprep.subr.mxu0 0.0
    %344 = vmatpush1.msra.mxu0 0.0
    %345 = vmatprep.subr.mxu0 0.0
    %346 = vmatpush1.msra.mxu0 0.0
    %347 = vmatprep.subr.mxu0 0.0
    %348 = vmatpush1.msra.mxu0 0.0
    %349 = vmatprep.subr.mxu0 0.0
    %350 = vmatpush1.msra.mxu0 0.0
    %351 = vmatprep.subr.mxu0 0.0
    %352 = vmatpush1.msra.mxu0 0.0
    %353 = vmatprep.subr.mxu0 0.0
    %354 = vmatpush1.msra.mxu0 0.0
    %355 = vmatprep.subr.mxu0 0.0
    %356 = vmatpush1.msra.mxu0 0.0
    %357 = vmatprep.subr.mxu0 0.0
    %358 = vmatpush1.msra.mxu0 0.0
    %359 = vmatprep.subr.mxu0 0.0
    %360 = vmatpush1.msra.mxu0 0.0
    %361 = vmatprep.subr.mxu0 0.0
    %362 = vmatpush1.msra.mxu0 0.0
    %363 = vmatprep.subr.mxu0 0.0
    %364 = vmatpush1.msra.mxu0 0.0
    %365 = vmatprep.subr.mxu0 0.0
    %366 = vmatpush1.msra.mxu0 0.0
    %367 = vmatprep.subr.mxu0 0.0
    %368 = vmatpush1.msra.mxu0 0.0
    %369 = vmatprep.subr.mxu0 0.0
    %370 = vmatpush1.msra.mxu0 0.0
    %371 = vmatprep.subr.mxu0 0.0
    %372 = vmatpush1.msra.mxu0 0.0
    %373 = vmatprep.subr.mxu0 0.0
    %374 = vmatpush1.msra.mxu0 0.0
    %375 = vmatprep.mubr.f32.mxu0 0.0
    %376 = vmatmul.mubr.f32.gmra.mrb[0].mxu0 %v306
    %v377 = vpop.f32.mrb[0].mxu0
    %v378 = vadd.f32 0.0, %v377
    %v379 = vpop.f32.mrb[0].mxu0
    %380 = vdwg.mxu0
    %v381 = vadd.f32 %v310, %v378
    %v382 = vtanh.pop %v381
    %s383 = scalar_lea.vmem [#allocation2], 24
    %384 = vst [vmem:[%s383] sm:$0xff] %v382
    %s385 = scalar_lea.vmem %s0, 32
    %v386 = vld [vmem:[%s385] sm:$0xff]
    %387 = vmatprep.subr.mxu0 0.0
    %388 = vmatpush1.msra.mxu0 %v67
    %389 = vmatprep.subr.mxu0 0.0
    %390 = vmatpush1.msra.mxu0 %v68
    %391 = vmatprep.subr.mxu0 0.0
    %392 = vmatpush1.msra.mxu0 %v69
    %393 = vmatprep.subr.mxu0 0.0
    %394 = vmatpush1.msra.mxu0 %v70
    %395 = vmatprep.subr.mxu0 0.0
    %396 = vmatpush1.msra.mxu0 %v71
    %397 = vmatprep.subr.mxu0 0.0
    %398 = vmatpush1.msra.mxu0 %v72
    %399 = vmatprep.subr.mxu0 0.0
    %400 = vmatpush1.msra.mxu0 %v73
    %401 = vmatprep.subr.mxu0 0.0
    %402 = vmatpush1.msra.mxu0 %v74
    %403 = vmatprep.subr.mxu0 0.0
    %404 = vmatpush1.msra.mxu0 %v75
    %405 = vmatprep.subr.mxu0 0.0
    %406 = vmatpush1.msra.mxu0 %v76
    %407 = vmatprep.subr.mxu0 0.0
    %408 = vmatpush1.msra.mxu0 %v77
    %409 = vmatprep.subr.mxu0 0.0
    %410 = vmatpush1.msra.mxu0 %v78
    %411 = vmatprep.subr.mxu0 0.0
    %412 = vmatpush1.msra.mxu0 %v79
    %413 = vmatprep.subr.mxu0 0.0
    %414 = vmatpush1.msra.mxu0 %v80
    %415 = vmatprep.subr.mxu0 0.0
    %416 = vmatpush1.msra.mxu0 %v81
    %417 = vmatprep.subr.mxu0 0.0
    %418 = vmatpush1.msra.mxu0 %v82
    %419 = vmatprep.subr.mxu0 0.0
    %420 = vmatpush1.msra.mxu0 0.0
    %421 = vmatprep.subr.mxu0 0.0
    %422 = vmatpush1.msra.mxu0 0.0
    %423 = vmatprep.subr.mxu0 0.0
    %424 = vmatpush1.msra.mxu0 0.0
    %425 = vmatprep.subr.mxu0 0.0
    %426 = vmatpush1.msra.mxu0 0.0
    %427 = vmatprep.subr.mxu0 0.0
    %428 = vmatpush1.msra.mxu0 0.0
    %429 = vmatprep.subr.mxu0 0.0
    %430 = vmatpush1.msra.mxu0 0.0
    %431 = vmatprep.subr.mxu0 0.0
    %432 = vmatpush1.msra.mxu0 0.0
    %433 = vmatprep.subr.mxu0 0.0
    %434 = vmatpush1.msra.mxu0 0.0
    %435 = vmatprep.subr.mxu0 0.0
    %436 = vmatpush1.msra.mxu0 0.0
    %437 = vmatprep.subr.mxu0 0.0
    %438 = vmatpush1.msra.mxu0 0.0
    %439 = vmatprep.subr.mxu0 0.0
    %440 = vmatpush1.msra.mxu0 0.0
    %441 = vmatprep.subr.mxu0 0.0
    %442 = vmatpush1.msra.mxu0 0.0
    %443 = vmatprep.subr.mxu0 0.0
    %444 = vmatpush1.msra.mxu0 0.0
    %445 = vmatprep.subr.mxu0 0.0
    %446 = vmatpush1.msra.mxu0 0.0
    %447 = vmatprep.subr.mxu0 0.0
    %448 = vmatpush1.msra.mxu0 0.0
    %449 = vmatprep.subr.mxu0 0.0
    %450 = vmatpush1.msra.mxu0 0.0
    %451 = vmatprep.mubr.f32.mxu0 0.0
    %452 = vmatmul.mubr.f32.gmra.mrb[0].mxu0 %v382
    %v453 = vpop.f32.mrb[0].mxu0
    %v454 = vadd.f32 0.0, %v453
    %v455 = vpop.f32.mrb[0].mxu0
    %456 = vdwg.mxu0
    %v457 = vadd.f32 %v386, %v454
    %v458 = vtanh.pop %v457
    %s459 = scalar_lea.vmem [#allocation2], 32
    %460 = vst [vmem:[%s459] sm:$0xff] %v458
    %s461 = scalar_lea.vmem %s0, 40
    %v462 = vld [vmem:[%s461] sm:$0xff]
    %463 = vmatprep.subr.mxu0 0.0
    %464 = vmatpush1.msra.mxu0 %v67
    %465 = vmatprep.subr.mxu0 0.0
    %466 = vmatpush1.msra.mxu0 %v68
    %467 = vmatprep.subr.mxu0 0.0
    %468 = vmatpush1.msra.mxu0 %v69
    %469 = vmatprep.subr.mxu0 0.0
    %470 = vmatpush1.msra.mxu0 %v70
    %471 = vmatprep.subr.mxu0 0.0
    %472 = vmatpush1.msra.mxu0 %v71
    %473 = vmatprep.subr.mxu0 0.0
    %474 = vmatpush1.msra.mxu0 %v72
    %475 = vmatprep.subr.mxu0 0.0
    %476 = vmatpush1.msra.mxu0 %v73
    %477 = vmatprep.subr.mxu0 0.0
    %478 = vmatpush1.msra.mxu0 %v74
    %479 = vmatprep.subr.mxu0 0.0
    %480 = vmatpush1.msra.mxu0 %v75
    %481 = vmatprep.subr.mxu0 0.0
    %482 = vmatpush1.msra.mxu0 %v76
    %483 = vmatprep.subr.mxu0 0.0
    %484 = vmatpush1.msra.mxu0 %v77
    %485 = vmatprep.subr.mxu0 0.0
    %486 = vmatpush1.msra.mxu0 %v78
    %487 = vmatprep.subr.mxu0 0.0
    %488 = vmatpush1.msra.mxu0 %v79
    %489 = vmatprep.subr.mxu0 0.0
    %490 = vmatpush1.msra.mxu0 %v80
    %491 = vmatprep.subr.mxu0 0.0
    %492 = vmatpush1.msra.mxu0 %v81
    %493 = vmatprep.subr.mxu0 0.0
    %494 = vmatpush1.msra.mxu0 %v82
    %495 = vmatprep.subr.mxu0 0.0
    %496 = vmatpush1.msra.mxu0 0.0
    %497 = vmatprep.subr.mxu0 0.0
    %498 = vmatpush1.msra.mxu0 0.0
    %499 = vmatprep.subr.mxu0 0.0
    %500 = vmatpush1.msra.mxu0 0.0
    %501 = vmatprep.subr.mxu0 0.0
    %502 = vmatpush1.msra.mxu0 0.0
    %503 = vmatprep.subr.mxu0 0.0
    %504 = vmatpush1.msra.mxu0 0.0
    %505 = vmatprep.subr.mxu0 0.0
    %506 = vmatpush1.msra.mxu0 0.0
    %507 = vmatprep.subr.mxu0 0.0
    %508 = vmatpush1.msra.mxu0 0.0
    %509 = vmatprep.subr.mxu0 0.0
    %510 = vmatpush1.msra.mxu0 0.0
    %511 = vmatprep.subr.mxu0 0.0
    %512 = vmatpush1.msra.mxu0 0.0
    %513 = vmatprep.subr.mxu0 0.0
    %514 = vmatpush1.msra.mxu0 0.0
    %515 = vmatprep.subr.mxu0 0.0
    %516 = vmatpush1.msra.mxu0 0.0
    %517 = vmatprep.subr.mxu0 0.0
    %518 = vmatpush1.msra.mxu0 0.0
    %519 = vmatprep.subr.mxu0 0.0
    %520 = vmatpush1.msra.mxu0 0.0
    %521 = vmatprep.subr.mxu0 0.0
    %522 = vmatpush1.msra.mxu0 0.0
    %523 = vmatprep.subr.mxu0 0.0
    %524 = vmatpush1.msra.mxu0 0.0
    %525 = vmatprep.subr.mxu0 0.0
    %526 = vmatpush1.msra.mxu0 0.0
    %527 = vmatprep.mubr.f32.mxu0 0.0
    %528 = vmatmul.mubr.f32.gmra.mrb[0].mxu0 %v458
    %v529 = vpop.f32.mrb[0].mxu0
    %v530 = vadd.f32 0.0, %v529
    %v531 = vpop.f32.mrb[0].mxu0
    %532 = vdwg.mxu0
    %v533 = vadd.f32 %v462, %v530
    %v534 = vtanh.pop %v533
    %s535 = scalar_lea.vmem [#allocation2], 40
    %536 = vst [vmem:[%s535] sm:$0xff] %v534
    %s537 = scalar_lea.vmem %s0, 48
    %v538 = vld [vmem:[%s537] sm:$0xff]
    %539 = vmatprep.subr.mxu0 0.0
    %540 = vmatpush1.msra.mxu0 %v67
    %541 = vmatprep.subr.mxu0 0.0
    %542 = vmatpush1.msra.mxu0 %v68
    %543 = vmatprep.subr.mxu0 0.0
    %544 = vmatpush1.msra.mxu0 %v69
    %545 = vmatprep.subr.mxu0 0.0
    %546 = vmatpush1.msra.mxu0 %v70
    %547 = vmatprep.subr.mxu0 0.0
    %548 = vmatpush1.msra.mxu0 %v71
    %549 = vmatprep.subr.mxu0 0.0
    %550 = vmatpush1.msra.mxu0 %v72
    %551 = vmatprep.subr.mxu0 0.0
    %552 = vmatpush1.msra.mxu0 %v73
    %553 = vmatprep.subr.mxu0 0.0
    %554 = vmatpush1.msra.mxu0 %v74
    %555 = vmatprep.subr.mxu0 0.0
    %556 = vmatpush1.msra.mxu0 %v75
    %557 = vmatprep.subr.mxu0 0.0
    %558 = vmatpush1.msra.mxu0 %v76
    %559 = vmatprep.subr.mxu0 0.0
    %560 = vmatpush1.msra.mxu0 %v77
    %561 = vmatprep.subr.mxu0 0.0
    %562 = vmatpush1.msra.mxu0 %v78
    %563 = vmatprep.subr.mxu0 0.0
    %564 = vmatpush1.msra.mxu0 %v79
    %565 = vmatprep.subr.mxu0 0.0
    %566 = vmatpush1.msra.mxu0 %v80
    %567 = vmatprep.subr.mxu0 0.0
    %568 = vmatpush1.msra.mxu0 %v81
    %569 = vmatprep.subr.mxu0 0.0
    %570 = vmatpush1.msra.mxu0 %v82
    %571 = vmatprep.subr.mxu0 0.0
    %572 = vmatpush1.msra.mxu0 0.0
    %573 = vmatprep.subr.mxu0 0.0
    %574 = vmatpush1.msra.mxu0 0.0
    %575 = vmatprep.subr.mxu0 0.0
    %576 = vmatpush1.msra.mxu0 0.0
    %577 = vmatprep.subr.mxu0 0.0
    %578 = vmatpush1.msra.mxu0 0.0
    %579 = vmatprep.subr.mxu0 0.0
    %580 = vmatpush1.msra.mxu0 0.0
    %581 = vmatprep.subr.mxu0 0.0
    %582 = vmatpush1.msra.mxu0 0.0
    %583 = vmatprep.subr.mxu0 0.0
    %584 = vmatpush1.msra.mxu0 0.0
    %585 = vmatprep.subr.mxu0 0.0
    %586 = vmatpush1.msra.mxu0 0.0
    %587 = vmatprep.subr.mxu0 0.0
    %588 = vmatpush1.msra.mxu0 0.0
    %589 = vmatprep.subr.mxu0 0.0
    %590 = vmatpush1.msra.mxu0 0.0
    %591 = vmatprep.subr.mxu0 0.0
    %592 = vmatpush1.msra.mxu0 0.0
    %593 = vmatprep.subr.mxu0 0.0
    %594 = vmatpush1.msra.mxu0 0.0
    %595 = vmatprep.subr.mxu0 0.0
    %596 = vmatpush1.msra.mxu0 0.0
    %597 = vmatprep.subr.mxu0 0.0
    %598 = vmatpush1.msra.mxu0 0.0
    %599 = vmatprep.subr.mxu0 0.0
    %600 = vmatpush1.msra.mxu0 0.0
    %601 = vmatprep.subr.mxu0 0.0
    %602 = vmatpush1.msra.mxu0 0.0
    %603 = vmatprep.mubr.f32.mxu0 0.0
    %604 = vmatmul.mubr.f32.gmra.mrb[0].mxu0 %v534
    %v605 = vpop.f32.mrb[0].mxu0
    %v606 = vadd.f32 0.0, %v605
    %v607 = vpop.f32.mrb[0].mxu0
    %608 = vdwg.mxu0
    %v609 = vadd.f32 %v538, %v606
    %v610 = vtanh.pop %v609
    %s611 = scalar_lea.vmem [#allocation2], 48
    %612 = vst [vmem:[%s611] sm:$0xff] %v610
    %s613 = scalar_lea.vmem %s0, 56
    %v614 = vld [vmem:[%s613] sm:$0xff]
    %615 = vmatprep.subr.mxu0 0.0
    %616 = vmatpush1.msra.mxu0 %v67
    %617 = vmatprep.subr.mxu0 0.0
    %618 = vmatpush1.msra.mxu0 %v68
    %619 = vmatprep.subr.mxu0 0.0
    %620 = vmatpush1.msra.mxu0 %v69
    %621 = vmatprep.subr.mxu0 0.0
    %622 = vmatpush1.msra.mxu0 %v70
    %623 = vmatprep.subr.mxu0 0.0
    %624 = vmatpush1.msra.mxu0 %v71
    %625 = vmatprep.subr.mxu0 0.0
    %626 = vmatpush1.msra.mxu0 %v72
    %627 = vmatprep.subr.mxu0 0.0
    %628 = vmatpush1.msra.mxu0 %v73
    %629 = vmatprep.subr.mxu0 0.0
    %630 = vmatpush1.msra.mxu0 %v74
    %631 = vmatprep.subr.mxu0 0.0
    %632 = vmatpush1.msra.mxu0 %v75
    %633 = vmatprep.subr.mxu0 0.0
    %634 = vmatpush1.msra.mxu0 %v76
    %635 = vmatprep.subr.mxu0 0.0
    %636 = vmatpush1.msra.mxu0 %v77
    %637 = vmatprep.subr.mxu0 0.0
    %638 = vmatpush1.msra.mxu0 %v78
    %639 = vmatprep.subr.mxu0 0.0
    %640 = vmatpush1.msra.mxu0 %v79
    %641 = vmatprep.subr.mxu0 0.0
    %642 = vmatpush1.msra.mxu0 %v80
    %643 = vmatprep.subr.mxu0 0.0
    %644 = vmatpush1.msra.mxu0 %v81
    %645 = vmatprep.subr.mxu0 0.0
    %646 = vmatpush1.msra.mxu0 %v82
    %647 = vmatprep.subr.mxu0 0.0
    %648 = vmatpush1.msra.mxu0 0.0
    %649 = vmatprep.subr.mxu0 0.0
    %650 = vmatpush1.msra.mxu0 0.0
    %651 = vmatprep.subr.mxu0 0.0
    %652 = vmatpush1.msra.mxu0 0.0
    %653 = vmatprep.subr.mxu0 0.0
    %654 = vmatpush1.msra.mxu0 0.0
    %655 = vmatprep.subr.mxu0 0.0
    %656 = vmatpush1.msra.mxu0 0.0
    %657 = vmatprep.subr.mxu0 0.0
    %658 = vmatpush1.msra.mxu0 0.0
    %659 = vmatprep.subr.mxu0 0.0
    %660 = vmatpush1.msra.mxu0 0.0
    %661 = vmatprep.subr.mxu0 0.0
    %662 = vmatpush1.msra.mxu0 0.0
    %663 = vmatprep.subr.mxu0 0.0
    %664 = vmatpush1.msra.mxu0 0.0
    %665 = vmatprep.subr.mxu0 0.0
    %666 = vmatpush1.msra.mxu0 0.0
    %667 = vmatprep.subr.mxu0 0.0
    %668 = vmatpush1.msra.mxu0 0.0
    %669 = vmatprep.subr.mxu0 0.0
    %670 = vmatpush1.msra.mxu0 0.0
    %671 = vmatprep.subr.mxu0 0.0
    %672 = vmatpush1.msra.mxu0 0.0
    %673 = vmatprep.subr.mxu0 0.0
    %674 = vmatpush1.msra.mxu0 0.0
    %675 = vmatprep.subr.mxu0 0.0
    %676 = vmatpush1.msra.mxu0 0.0
    %677 = vmatprep.subr.mxu0 0.0
    %678 = vmatpush1.msra.mxu0 0.0
    %679 = vmatprep.mubr.f32.mxu0 0.0
    %680 = vmatmul.mubr.f32.gmra.mrb[0].mxu0 %v610
    %v681 = vpop.f32.mrb[0].mxu0
    %v682 = vadd.f32 0.0, %v681
    %v683 = vpop.f32.mrb[0].mxu0
    %684 = vdwg.mxu0
    %v685 = vadd.f32 %v614, %v682
    %v686 = vtanh.pop %v685
    %s687 = scalar_lea.vmem [#allocation2], 56
    %688 = vst [vmem:[%s687] sm:$0xff] %v686
    %v689 = vld [vmem:[#allocation6] sm:$0xff]
    %v690 = vld [vmem:[#allocation6 + $0x8] sm:$0xff]
    %v691 = vld [vmem:[#allocation6 + $0x10] sm:$0xff]
    %v692 = vld [vmem:[#allocation6 + $0x18] sm:$0xff]
    %v693 = vld [vmem:[#allocation6 + $0x20] sm:$0xff]
    %v694 = vld [vmem:[#allocation6 + $0x28] sm:$0xff]
    %v695 = vld [vmem:[#allocation6 + $0x30] sm:$0xff]
    %v696 = vld [vmem:[#allocation6 + $0x38] sm:$0xff]
    %v697 = vld [vmem:[#allocation6 + $0x40] sm:$0xff]
    %v698 = vld [vmem:[#allocation6 + $0x48] sm:$0xff]
    %v699 = vld [vmem:[#allocation6 + $0x50] sm:$0xff]
    %v700 = vld [vmem:[#allocation6 + $0x58] sm:$0xff]
    %v701 = vld [vmem:[#allocation6 + $0x60] sm:$0xff]
    %v702 = vld [vmem:[#allocation6 + $0x68] sm:$0xff]
    %v703 = vld [vmem:[#allocation6 + $0x70] sm:$0xff]
    %v704 = vld [vmem:[#allocation6 + $0x78] sm:$0xff]
    %v705 = vld [vmem:[#allocation8] sm:$0xff]
    %v706 = vld [vmem:[#allocation8 + $0x8] sm:$0xff]
    %v707 = vld [vmem:[#allocation8 + $0x10] sm:$0xff]
    %v708 = vld [vmem:[#allocation8 + $0x18] sm:$0xff]
    %v709 = vld [vmem:[#allocation8 + $0x20] sm:$0xff]
    %v710 = vld [vmem:[#allocation8 + $0x28] sm:$0xff]
    %v711 = vld [vmem:[#allocation8 + $0x30] sm:$0xff]
    %v712 = vld [vmem:[#allocation8 + $0x38] sm:$0xff]
    %v713 = vld [vmem:[#allocation8 + $0x40] sm:$0xff]
    %v714 = vld [vmem:[#allocation8 + $0x48] sm:$0xff]
    %v715 = vld [vmem:[#allocation8 + $0x50] sm:$0xff]
    %v716 = vld [vmem:[#allocation8 + $0x58] sm:$0xff]
    %v717 = vld [vmem:[#allocation8 + $0x60] sm:$0xff]
    %v718 = vld [vmem:[#allocation8 + $0x68] sm:$0xff]
    %v719 = vld [vmem:[#allocation8 + $0x70] sm:$0xff]
    %v720 = vld [vmem:[#allocation8 + $0x78] sm:$0xff]
    %v721 = vld [vmem:[%s4] sm:$0x1]
    %v722 = vld [vmem:[#allocation2] sm:$0xff]
    %v723 = vld [vmem:[#allocation2 + $0x8] sm:$0xff]
    %v724 = vld [vmem:[#allocation2 + $0x10] sm:$0xff]
    %v725 = vld [vmem:[#allocation2 + $0x18] sm:$0xff]
    %v726 = vld [vmem:[#allocation2 + $0x20] sm:$0xff]
    %v727 = vld [vmem:[#allocation2 + $0x28] sm:$0xff]
    %v728 = vld [vmem:[#allocation2 + $0x30] sm:$0xff]
    %v729 = vld [vmem:[#allocation2 + $0x38] sm:$0xff]
    %v731 = vlaneseq
    %v732 = vshrl.u32 %v731, 7
    %v733 = vsub.s32 0, %v732
    %v734 = vrot.slane %v721, %v733
    %736 = vmatprep.subr.mxu0 0.0
    %737 = vmatpush1.msra.mxu0 %v689
    %738 = vmatprep.subr.mxu0 0.0
    %739 = vmatpush1.msra.mxu0 %v690
    %740 = vmatprep.subr.mxu0 0.0
    %741 = vmatpush1.msra.mxu0 %v691
    %742 = vmatprep.subr.mxu0 0.0
    %743 = vmatpush1.msra.mxu0 %v692
    %744 = vmatprep.subr.mxu0 0.0
    %745 = vmatpush1.msra.mxu0 %v693
    %746 = vmatprep.subr.mxu0 0.0
    %747 = vmatpush1.msra.mxu0 %v694
    %748 = vmatprep.subr.mxu0 0.0
    %749 = vmatpush1.msra.mxu0 %v695
    %750 = vmatprep.subr.mxu0 0.0
    %751 = vmatpush1.msra.mxu0 %v696
    %752 = vmatprep.subr.mxu0 0.0
    %753 = vmatpush1.msra.mxu0 %v697
    %754 = vmatprep.subr.mxu0 0.0
    %755 = vmatpush1.msra.mxu0 %v698
    %756 = vmatprep.subr.mxu0 0.0
    %757 = vmatpush1.msra.mxu0 %v699
    %758 = vmatprep.subr.mxu0 0.0
    %759 = vmatpush1.msra.mxu0 %v700
    %760 = vmatprep.subr.mxu0 0.0
    %761 = vmatpush1.msra.mxu0 %v701
    %762 = vmatprep.subr.mxu0 0.0
    %763 = vmatpush1.msra.mxu0 %v702
    %764 = vmatprep.subr.mxu0 0.0
    %765 = vmatpush1.msra.mxu0 %v703
    %766 = vmatprep.subr.mxu0 0.0
    %767 = vmatpush1.msra.mxu0 %v704
    %768 = vmatprep.subr.mxu0 0.0
    %769 = vmatpush1.msra.mxu0 0.0
    %770 = vmatprep.subr.mxu0 0.0
    %771 = vmatpush1.msra.mxu0 0.0
    %772 = vmatprep.subr.mxu0 0.0
    %773 = vmatpush1.msra.mxu0 0.0
    %774 = vmatprep.subr.mxu0 0.0
    %775 = vmatpush1.msra.mxu0 0.0
    %776 = vmatprep.subr.mxu0 0.0
    %777 = vmatpush1.msra.mxu0 0.0
    %778 = vmatprep.subr.mxu0 0.0
    %779 = vmatpush1.msra.mxu0 0.0
    %780 = vmatprep.subr.mxu0 0.0
    %781 = vmatpush1.msra.mxu0 0.0
    %782 = vmatprep.subr.mxu0 0.0
    %783 = vmatpush1.msra.mxu0 0.0
    %784 = vmatprep.subr.mxu0 0.0
    %785 = vmatpush1.msra.mxu0 0.0
    %786 = vmatprep.subr.mxu0 0.0
    %787 = vmatpush1.msra.mxu0 0.0
    %788 = vmatprep.subr.mxu0 0.0
    %789 = vmatpush1.msra.mxu0 0.0
    %790 = vmatprep.subr.mxu0 0.0
    %791 = vmatpush1.msra.mxu0 0.0
    %792 = vmatprep.subr.mxu0 0.0
    %793 = vmatpush1.msra.mxu0 0.0
    %794 = vmatprep.subr.mxu0 0.0
    %795 = vmatpush1.msra.mxu0 0.0
    %796 = vmatprep.subr.mxu0 0.0
    %797 = vmatpush1.msra.mxu0 0.0
    %798 = vmatprep.subr.mxu0 0.0
    %799 = vmatpush1.msra.mxu0 0.0
    %800 = vmatprep.mubr.f32.mxu0 0.0
    %801 = vmatmul.mubr.f32.gmra.mrb[0].mxu0 %v722
    %v802 = vpop.f32.mrb[0].mxu0
    %v803 = vadd.f32 %v734, %v802
    %v804 = vpop.f32.mrb[0].mxu0
    %805 = vmatprep.mubr.f32.mxu0 0.0
    %806 = vmatmul.mubr.f32.gmra.mrb[0].mxu0 %v723
    %v807 = vpop.f32.mrb[0].mxu0
    %v808 = vadd.f32 %v734, %v807
    %v809 = vpop.f32.mrb[0].mxu0
    %810 = vmatprep.mubr.f32.mxu0 0.0
    %811 = vmatmul.mubr.f32.gmra.mrb[0].mxu0 %v724
    %v812 = vpop.f32.mrb[0].mxu0
    %v813 = vadd.f32 %v734, %v812
    %v814 = vpop.f32.mrb[0].mxu0
    %815 = vmatprep.mubr.f32.mxu0 0.0
    %816 = vmatmul.mubr.f32.gmra.mrb[0].mxu0 %v725
    %v817 = vpop.f32.mrb[0].mxu0
    %v818 = vadd.f32 %v734, %v817
    %v819 = vpop.f32.mrb[0].mxu0
    %820 = vmatprep.mubr.f32.mxu0 0.0
    %821 = vmatmul.mubr.f32.gmra.mrb[0].mxu0 %v726
    %v822 = vpop.f32.mrb[0].mxu0
    %v823 = vadd.f32 %v734, %v822
    %v824 = vpop.f32.mrb[0].mxu0
    %825 = vmatprep.mubr.f32.mxu0 0.0
    %826 = vmatmul.mubr.f32.gmra.mrb[0].mxu0 %v727
    %v827 = vpop.f32.mrb[0].mxu0
    %v828 = vadd.f32 %v734, %v827
    %v829 = vpop.f32.mrb[0].mxu0
    %830 = vmatprep.mubr.f32.mxu0 0.0
    %831 = vmatmul.mubr.f32.gmra.mrb[0].mxu0 %v728
    %v832 = vpop.f32.mrb[0].mxu0
    %v833 = vadd.f32 %v734, %v832
    %v834 = vpop.f32.mrb[0].mxu0
    %835 = vmatprep.mubr.f32.mxu0 0.0
    %836 = vmatmul.mubr.f32.gmra.mrb[0].mxu0 %v729
    %v837 = vpop.f32.mrb[0].mxu0
    %v838 = vadd.f32 %v734, %v837
    %v839 = vpop.f32.mrb[0].mxu0
    %840 = vdwg.mxu0
    %841 = vst [vmem:[#allocation3] sm:$0xff] %v803
    %842 = vst [vmem:[#allocation3 + $0x8] sm:$0xff] %v808
    %843 = vst [vmem:[#allocation3 + $0x10] sm:$0xff] %v813
    %844 = vst [vmem:[#allocation3 + $0x18] sm:$0xff] %v818
    %845 = vst [vmem:[#allocation3 + $0x20] sm:$0xff] %v823
    %846 = vst [vmem:[#allocation3 + $0x28] sm:$0xff] %v828
    %847 = vst [vmem:[#allocation3 + $0x30] sm:$0xff] %v833
    %848 = vst [vmem:[#allocation3 + $0x38] sm:$0xff] %v838
    %v849 = vld [vmem:[#allocation3] sm:$0xff]
    %850 = vmatprep.subr.mxu0 0.0
    %851 = vmatpush1.msra.mxu0 %v705
    %852 = vmatprep.subr.mxu0 0.0
    %853 = vmatpush1.msra.mxu0 %v706
    %854 = vmatprep.subr.mxu0 0.0
    %855 = vmatpush1.msra.mxu0 %v707
    %856 = vmatprep.subr.mxu0 0.0
    %857 = vmatpush1.msra.mxu0 %v708
    %858 = vmatprep.subr.mxu0 0.0
    %859 = vmatpush1.msra.mxu0 %v709
    %860 = vmatprep.subr.mxu0 0.0
    %861 = vmatpush1.msra.mxu0 %v710
    %862 = vmatprep.subr.mxu0 0.0
    %863 = vmatpush1.msra.mxu0 %v711
    %864 = vmatprep.subr.mxu0 0.0
    %865 = vmatpush1.msra.mxu0 %v712
    %866 = vmatprep.subr.mxu0 0.0
    %867 = vmatpush1.msra.mxu0 %v713
    %868 = vmatprep.subr.mxu0 0.0
    %869 = vmatpush1.msra.mxu0 %v714
    %870 = vmatprep.subr.mxu0 0.0
    %871 = vmatpush1.msra.mxu0 %v715
    %872 = vmatprep.subr.mxu0 0.0
    %873 = vmatpush1.msra.mxu0 %v716
    %874 = vmatprep.subr.mxu0 0.0
    %875 = vmatpush1.msra.mxu0 %v717
    %876 = vmatprep.subr.mxu0 0.0
    %877 = vmatpush1.msra.mxu0 %v718
    %878 = vmatprep.subr.mxu0 0.0
    %879 = vmatpush1.msra.mxu0 %v719
    %880 = vmatprep.subr.mxu0 0.0
    %881 = vmatpush1.msra.mxu0 %v720
    %882 = vmatprep.subr.mxu0 0.0
    %883 = vmatpush1.msra.mxu0 0.0
    %884 = vmatprep.subr.mxu0 0.0
    %885 = vmatpush1.msra.mxu0 0.0
    %886 = vmatprep.subr.mxu0 0.0
    %887 = vmatpush1.msra.mxu0 0.0
    %888 = vmatprep.subr.mxu0 0.0
    %889 = vmatpush1.msra.mxu0 0.0
    %890 = vmatprep.subr.mxu0 0.0
    %891 = vmatpush1.msra.mxu0 0.0
    %892 = vmatprep.subr.mxu0 0.0
    %893 = vmatpush1.msra.mxu0 0.0
    %894 = vmatprep.subr.mxu0 0.0
    %895 = vmatpush1.msra.mxu0 0.0
    %896 = vmatprep.subr.mxu0 0.0
    %897 = vmatpush1.msra.mxu0 0.0
    %898 = vmatprep.subr.mxu0 0.0
    %899 = vmatpush1.msra.mxu0 0.0
    %900 = vmatprep.subr.mxu0 0.0
    %901 = vmatpush1.msra.mxu0 0.0
    %902 = vmatprep.subr.mxu0 0.0
    %903 = vmatpush1.msra.mxu0 0.0
    %904 = vmatprep.subr.mxu0 0.0
    %905 = vmatpush1.msra.mxu0 0.0
    %906 = vmatprep.subr.mxu0 0.0
    %907 = vmatpush1.msra.mxu0 0.0
    %908 = vmatprep.subr.mxu0 0.0
    %909 = vmatpush1.msra.mxu0 0.0
    %910 = vmatprep.subr.mxu0 0.0
    %911 = vmatpush1.msra.mxu0 0.0
    %912 = vmatprep.subr.mxu0 0.0
    %913 = vmatpush1.msra.mxu0 0.0
    %914 = vmatprep.mubr.f32.mxu0 0.0
    %915 = vmatmul.mubr.f32.gmra.mrb[0].mxu0 0.0
    %v916 = vpop.f32.mrb[0].mxu0
    %v917 = vadd.f32 0.0, %v916
    %v918 = vpop.f32.mrb[0].mxu0
    %919 = vdwg.mxu0
    %v920 = vadd.f32 %v849, %v917
    %v921 = vtanh.pop %v920
    %s922 = scalar_lea.vmem [#allocation3], 8
    %v923 = vld [vmem:[%s922] sm:$0xff]
    %924 = vmatprep.subr.mxu0 0.0
    %925 = vmatpush1.msra.mxu0 %v705
    %926 = vmatprep.subr.mxu0 0.0
    %927 = vmatpush1.msra.mxu0 %v706
    %928 = vmatprep.subr.mxu0 0.0
    %929 = vmatpush1.msra.mxu0 %v707
    %930 = vmatprep.subr.mxu0 0.0
    %931 = vmatpush1.msra.mxu0 %v708
    %932 = vmatprep.subr.mxu0 0.0
    %933 = vmatpush1.msra.mxu0 %v709
    %934 = vmatprep.subr.mxu0 0.0
    %935 = vmatpush1.msra.mxu0 %v710
    %936 = vmatprep.subr.mxu0 0.0
    %937 = vmatpush1.msra.mxu0 %v711
    %938 = vmatprep.subr.mxu0 0.0
    %939 = vmatpush1.msra.mxu0 %v712
    %940 = vmatprep.subr.mxu0 0.0
    %941 = vmatpush1.msra.mxu0 %v713
    %942 = vmatprep.subr.mxu0 0.0
    %943 = vmatpush1.msra.mxu0 %v714
    %944 = vmatprep.subr.mxu0 0.0
    %945 = vmatpush1.msra.mxu0 %v715
    %946 = vmatprep.subr.mxu0 0.0
    %947 = vmatpush1.msra.mxu0 %v716
    %948 = vmatprep.subr.mxu0 0.0
    %949 = vmatpush1.msra.mxu0 %v717
    %950 = vmatprep.subr.mxu0 0.0
    %951 = vmatpush1.msra.mxu0 %v718
    %952 = vmatprep.subr.mxu0 0.0
    %953 = vmatpush1.msra.mxu0 %v719
    %954 = vmatprep.subr.mxu0 0.0
    %955 = vmatpush1.msra.mxu0 %v720
    %956 = vmatprep.subr.mxu0 0.0
    %957 = vmatpush1.msra.mxu0 0.0
    %958 = vmatprep.subr.mxu0 0.0
    %959 = vmatpush1.msra.mxu0 0.0
    %960 = vmatprep.subr.mxu0 0.0
    %961 = vmatpush1.msra.mxu0 0.0
    %962 = vmatprep.subr.mxu0 0.0
    %963 = vmatpush1.msra.mxu0 0.0
    %964 = vmatprep.subr.mxu0 0.0
    %965 = vmatpush1.msra.mxu0 0.0
    %966 = vmatprep.subr.mxu0 0.0
    %967 = vmatpush1.msra.mxu0 0.0
    %968 = vmatprep.subr.mxu0 0.0
    %969 = vmatpush1.msra.mxu0 0.0
    %970 = vmatprep.subr.mxu0 0.0
    %971 = vmatpush1.msra.mxu0 0.0
    %972 = vmatprep.subr.mxu0 0.0
    %973 = vmatpush1.msra.mxu0 0.0
    %974 = vmatprep.subr.mxu0 0.0
    %975 = vmatpush1.msra.mxu0 0.0
    %976 = vmatprep.subr.mxu0 0.0
    %977 = vmatpush1.msra.mxu0 0.0
    %978 = vmatprep.subr.mxu0 0.0
    %979 = vmatpush1.msra.mxu0 0.0
    %980 = vmatprep.subr.mxu0 0.0
    %981 = vmatpush1.msra.mxu0 0.0
    %982 = vmatprep.subr.mxu0 0.0
    %983 = vmatpush1.msra.mxu0 0.0
    %984 = vmatprep.subr.mxu0 0.0
    %985 = vmatpush1.msra.mxu0 0.0
    %986 = vmatprep.subr.mxu0 0.0
    %987 = vmatpush1.msra.mxu0 0.0
    %988 = vmatprep.mubr.f32.mxu0 0.0
    %989 = vmatmul.mubr.f32.gmra.mrb[0].mxu0 %v921
    %v990 = vpop.f32.mrb[0].mxu0
    %v991 = vadd.f32 0.0, %v990
    %v992 = vpop.f32.mrb[0].mxu0
    %993 = vdwg.mxu0
    %v994 = vadd.f32 %v923, %v991
    %v995 = vtanh.pop %v994
    %s996 = scalar_lea.vmem [#allocation3], 16
    %v997 = vld [vmem:[%s996] sm:$0xff]
    %998 = vmatprep.subr.mxu0 0.0
    %999 = vmatpush1.msra.mxu0 %v705
    %1000 = vmatprep.subr.mxu0 0.0
    %1001 = vmatpush1.msra.mxu0 %v706
    %1002 = vmatprep.subr.mxu0 0.0
    %1003 = vmatpush1.msra.mxu0 %v707
    %1004 = vmatprep.subr.mxu0 0.0
    %1005 = vmatpush1.msra.mxu0 %v708
    %1006 = vmatprep.subr.mxu0 0.0
    %1007 = vmatpush1.msra.mxu0 %v709
    %1008 = vmatprep.subr.mxu0 0.0
    %1009 = vmatpush1.msra.mxu0 %v710
    %1010 = vmatprep.subr.mxu0 0.0
    %1011 = vmatpush1.msra.mxu0 %v711
    %1012 = vmatprep.subr.mxu0 0.0
    %1013 = vmatpush1.msra.mxu0 %v712
    %1014 = vmatprep.subr.mxu0 0.0
    %1015 = vmatpush1.msra.mxu0 %v713
    %1016 = vmatprep.subr.mxu0 0.0
    %1017 = vmatpush1.msra.mxu0 %v714
    %1018 = vmatprep.subr.mxu0 0.0
    %1019 = vmatpush1.msra.mxu0 %v715
    %1020 = vmatprep.subr.mxu0 0.0
    %1021 = vmatpush1.msra.mxu0 %v716
    %1022 = vmatprep.subr.mxu0 0.0
    %1023 = vmatpush1.msra.mxu0 %v717
    %1024 = vmatprep.subr.mxu0 0.0
    %1025 = vmatpush1.msra.mxu0 %v718
    %1026 = vmatprep.subr.mxu0 0.0
    %1027 = vmatpush1.msra.mxu0 %v719
    %1028 = vmatprep.subr.mxu0 0.0
    %1029 = vmatpush1.msra.mxu0 %v720
    %1030 = vmatprep.subr.mxu0 0.0
    %1031 = vmatpush1.msra.mxu0 0.0
    %1032 = vmatprep.subr.mxu0 0.0
    %1033 = vmatpush1.msra.mxu0 0.0
    %1034 = vmatprep.subr.mxu0 0.0
    %1035 = vmatpush1.msra.mxu0 0.0
    %1036 = vmatprep.subr.mxu0 0.0
    %1037 = vmatpush1.msra.mxu0 0.0
    %1038 = vmatprep.subr.mxu0 0.0
    %1039 = vmatpush1.msra.mxu0 0.0
    %1040 = vmatprep.subr.mxu0 0.0
    %1041 = vmatpush1.msra.mxu0 0.0
    %1042 = vmatprep.subr.mxu0 0.0
    %1043 = vmatpush1.msra.mxu0 0.0
    %1044 = vmatprep.subr.mxu0 0.0
    %1045 = vmatpush1.msra.mxu0 0.0
    %1046 = vmatprep.subr.mxu0 0.0
    %1047 = vmatpush1.msra.mxu0 0.0
    %1048 = vmatprep.subr.mxu0 0.0
    %1049 = vmatpush1.msra.mxu0 0.0
    %1050 = vmatprep.subr.mxu0 0.0
    %1051 = vmatpush1.msra.mxu0 0.0
    %1052 = vmatprep.subr.mxu0 0.0
    %1053 = vmatpush1.msra.mxu0 0.0
    %1054 = vmatprep.subr.mxu0 0.0
    %1055 = vmatpush1.msra.mxu0 0.0
    %1056 = vmatprep.subr.mxu0 0.0
    %1057 = vmatpush1.msra.mxu0 0.0
    %1058 = vmatprep.subr.mxu0 0.0
    %1059 = vmatpush1.msra.mxu0 0.0
    %1060 = vmatprep.subr.mxu0 0.0
    %1061 = vmatpush1.msra.mxu0 0.0
    %1062 = vmatprep.mubr.f32.mxu0 0.0
    %1063 = vmatmul.mubr.f32.gmra.mrb[0].mxu0 %v995
    %v1064 = vpop.f32.mrb[0].mxu0
    %v1065 = vadd.f32 0.0, %v1064
    %v1066 = vpop.f32.mrb[0].mxu0
    %1067 = vdwg.mxu0
    %v1068 = vadd.f32 %v997, %v1065
    %v1069 = vtanh.pop %v1068
    %s1070 = scalar_lea.vmem [#allocation3], 24
    %v1071 = vld [vmem:[%s1070] sm:$0xff]
    %1072 = vmatprep.subr.mxu0 0.0
    %1073 = vmatpush1.msra.mxu0 %v705
    %1074 = vmatprep.subr.mxu0 0.0
    %1075 = vmatpush1.msra.mxu0 %v706
    %1076 = vmatprep.subr.mxu0 0.0
    %1077 = vmatpush1.msra.mxu0 %v707
    %1078 = vmatprep.subr.mxu0 0.0
    %1079 = vmatpush1.msra.mxu0 %v708
    %1080 = vmatprep.subr.mxu0 0.0
    %1081 = vmatpush1.msra.mxu0 %v709
    %1082 = vmatprep.subr.mxu0 0.0
    %1083 = vmatpush1.msra.mxu0 %v710
    %1084 = vmatprep.subr.mxu0 0.0
    %1085 = vmatpush1.msra.mxu0 %v711
    %1086 = vmatprep.subr.mxu0 0.0
    %1087 = vmatpush1.msra.mxu0 %v712
    %1088 = vmatprep.subr.mxu0 0.0
    %1089 = vmatpush1.msra.mxu0 %v713
    %1090 = vmatprep.subr.mxu0 0.0
    %1091 = vmatpush1.msra.mxu0 %v714
    %1092 = vmatprep.subr.mxu0 0.0
    %1093 = vmatpush1.msra.mxu0 %v715
    %1094 = vmatprep.subr.mxu0 0.0
    %1095 = vmatpush1.msra.mxu0 %v716
    %1096 = vmatprep.subr.mxu0 0.0
    %1097 = vmatpush1.msra.mxu0 %v717
    %1098 = vmatprep.subr.mxu0 0.0
    %1099 = vmatpush1.msra.mxu0 %v718
    %1100 = vmatprep.subr.mxu0 0.0
    %1101 = vmatpush1.msra.mxu0 %v719
    %1102 = vmatprep.subr.mxu0 0.0
    %1103 = vmatpush1.msra.mxu0 %v720
    %1104 = vmatprep.subr.mxu0 0.0
    %1105 = vmatpush1.msra.mxu0 0.0
    %1106 = vmatprep.subr.mxu0 0.0
    %1107 = vmatpush1.msra.mxu0 0.0
    %1108 = vmatprep.subr.mxu0 0.0
    %1109 = vmatpush1.msra.mxu0 0.0
    %1110 = vmatprep.subr.mxu0 0.0
    %1111 = vmatpush1.msra.mxu0 0.0
    %1112 = vmatprep.subr.mxu0 0.0
    %1113 = vmatpush1.msra.mxu0 0.0
    %1114 = vmatprep.subr.mxu0 0.0
    %1115 = vmatpush1.msra.mxu0 0.0
    %1116 = vmatprep.subr.mxu0 0.0
    %1117 = vmatpush1.msra.mxu0 0.0
    %1118 = vmatprep.subr.mxu0 0.0
    %1119 = vmatpush1.msra.mxu0 0.0
    %1120 = vmatprep.subr.mxu0 0.0
    %1121 = vmatpush1.msra.mxu0 0.0
    %1122 = vmatprep.subr.mxu0 0.0
    %1123 = vmatpush1.msra.mxu0 0.0
    %1124 = vmatprep.subr.mxu0 0.0
    %1125 = vmatpush1.msra.mxu0 0.0
    %1126 = vmatprep.subr.mxu0 0.0
    %1127 = vmatpush1.msra.mxu0 0.0
    %1128 = vmatprep.subr.mxu0 0.0
    %1129 = vmatpush1.msra.mxu0 0.0
    %1130 = vmatprep.subr.mxu0 0.0
    %1131 = vmatpush1.msra.mxu0 0.0
    %1132 = vmatprep.subr.mxu0 0.0
    %1133 = vmatpush1.msra.mxu0 0.0
    %1134 = vmatprep.subr.mxu0 0.0
    %1135 = vmatpush1.msra.mxu0 0.0
    %1136 = vmatprep.mubr.f32.mxu0 0.0
    %1137 = vmatmul.mubr.f32.gmra.mrb[0].mxu0 %v1069
    %v1138 = vpop.f32.mrb[0].mxu0
    %v1139 = vadd.f32 0.0, %v1138
    %v1140 = vpop.f32.mrb[0].mxu0
    %1141 = vdwg.mxu0
    %v1142 = vadd.f32 %v1071, %v1139
    %v1143 = vtanh.pop %v1142
    %s1144 = scalar_lea.vmem [#allocation3], 32
    %v1145 = vld [vmem:[%s1144] sm:$0xff]
    %1146 = vmatprep.subr.mxu0 0.0
    %1147 = vmatpush1.msra.mxu0 %v705
    %1148 = vmatprep.subr.mxu0 0.0
    %1149 = vmatpush1.msra.mxu0 %v706
    %1150 = vmatprep.subr.mxu0 0.0
    %1151 = vmatpush1.msra.mxu0 %v707
    %1152 = vmatprep.subr.mxu0 0.0
    %1153 = vmatpush1.msra.mxu0 %v708
    %1154 = vmatprep.subr.mxu0 0.0
    %1155 = vmatpush1.msra.mxu0 %v709
    %1156 = vmatprep.subr.mxu0 0.0
    %1157 = vmatpush1.msra.mxu0 %v710
    %1158 = vmatprep.subr.mxu0 0.0
    %1159 = vmatpush1.msra.mxu0 %v711
    %1160 = vmatprep.subr.mxu0 0.0
    %1161 = vmatpush1.msra.mxu0 %v712
    %1162 = vmatprep.subr.mxu0 0.0
    %1163 = vmatpush1.msra.mxu0 %v713
    %1164 = vmatprep.subr.mxu0 0.0
    %1165 = vmatpush1.msra.mxu0 %v714
    %1166 = vmatprep.subr.mxu0 0.0
    %1167 = vmatpush1.msra.mxu0 %v715
    %1168 = vmatprep.subr.mxu0 0.0
    %1169 = vmatpush1.msra.mxu0 %v716
    %1170 = vmatprep.subr.mxu0 0.0
    %1171 = vmatpush1.msra.mxu0 %v717
    %1172 = vmatprep.subr.mxu0 0.0
    %1173 = vmatpush1.msra.mxu0 %v718
    %1174 = vmatprep.subr.mxu0 0.0
    %1175 = vmatpush1.msra.mxu0 %v719
    %1176 = vmatprep.subr.mxu0 0.0
    %1177 = vmatpush1.msra.mxu0 %v720
    %1178 = vmatprep.subr.mxu0 0.0
    %1179 = vmatpush1.msra.mxu0 0.0
    %1180 = vmatprep.subr.mxu0 0.0
    %1181 = vmatpush1.msra.mxu0 0.0
    %1182 = vmatprep.subr.mxu0 0.0
    %1183 = vmatpush1.msra.mxu0 0.0
    %1184 = vmatprep.subr.mxu0 0.0
    %1185 = vmatpush1.msra.mxu0 0.0
    %1186 = vmatprep.subr.mxu0 0.0
    %1187 = vmatpush1.msra.mxu0 0.0
    %1188 = vmatprep.subr.mxu0 0.0
    %1189 = vmatpush1.msra.mxu0 0.0
    %1190 = vmatprep.subr.mxu0 0.0
    %1191 = vmatpush1.msra.mxu0 0.0
    %1192 = vmatprep.subr.mxu0 0.0
    %1193 = vmatpush1.msra.mxu0 0.0
    %1194 = vmatprep.subr.mxu0 0.0
    %1195 = vmatpush1.msra.mxu0 0.0
    %1196 = vmatprep.subr.mxu0 0.0
    %1197 = vmatpush1.msra.mxu0 0.0
    %1198 = vmatprep.subr.mxu0 0.0
    %1199 = vmatpush1.msra.mxu0 0.0
    %1200 = vmatprep.subr.mxu0 0.0
    %1201 = vmatpush1.msra.mxu0 0.0
    %1202 = vmatprep.subr.mxu0 0.0
    %1203 = vmatpush1.msra.mxu0 0.0
    %1204 = vmatprep.subr.mxu0 0.0
    %1205 = vmatpush1.msra.mxu0 0.0
    %1206 = vmatprep.subr.mxu0 0.0
    %1207 = vmatpush1.msra.mxu0 0.0
    %1208 = vmatprep.subr.mxu0 0.0
    %1209 = vmatpush1.msra.mxu0 0.0
    %1210 = vmatprep.mubr.f32.mxu0 0.0
    %1211 = vmatmul.mubr.f32.gmra.mrb[0].mxu0 %v1143
    %v1212 = vpop.f32.mrb[0].mxu0
    %v1213 = vadd.f32 0.0, %v1212
    %v1214 = vpop.f32.mrb[0].mxu0
    %1215 = vdwg.mxu0
    %v1216 = vadd.f32 %v1145, %v1213
    %v1217 = vtanh.pop %v1216
    %s1218 = scalar_lea.vmem [#allocation3], 40
    %v1219 = vld [vmem:[%s1218] sm:$0xff]
    %1220 = vmatprep.subr.mxu0 0.0
    %1221 = vmatpush1.msra.mxu0 %v705
    %1222 = vmatprep.subr.mxu0 0.0
    %1223 = vmatpush1.msra.mxu0 %v706
    %1224 = vmatprep.subr.mxu0 0.0
    %1225 = vmatpush1.msra.mxu0 %v707
    %1226 = vmatprep.subr.mxu0 0.0
    %1227 = vmatpush1.msra.mxu0 %v708
    %1228 = vmatprep.subr.mxu0 0.0
    %1229 = vmatpush1.msra.mxu0 %v709
    %1230 = vmatprep.subr.mxu0 0.0
    %1231 = vmatpush1.msra.mxu0 %v710
    %1232 = vmatprep.subr.mxu0 0.0
    %1233 = vmatpush1.msra.mxu0 %v711
    %1234 = vmatprep.subr.mxu0 0.0
    %1235 = vmatpush1.msra.mxu0 %v712
    %1236 = vmatprep.subr.mxu0 0.0
    %1237 = vmatpush1.msra.mxu0 %v713
    %1238 = vmatprep.subr.mxu0 0.0
    %1239 = vmatpush1.msra.mxu0 %v714
    %1240 = vmatprep.subr.mxu0 0.0
    %1241 = vmatpush1.msra.mxu0 %v715
    %1242 = vmatprep.subr.mxu0 0.0
    %1243 = vmatpush1.msra.mxu0 %v716
    %1244 = vmatprep.subr.mxu0 0.0
    %1245 = vmatpush1.msra.mxu0 %v717
    %1246 = vmatprep.subr.mxu0 0.0
    %1247 = vmatpush1.msra.mxu0 %v718
    %1248 = vmatprep.subr.mxu0 0.0
    %1249 = vmatpush1.msra.mxu0 %v719
    %1250 = vmatprep.subr.mxu0 0.0
    %1251 = vmatpush1.msra.mxu0 %v720
    %1252 = vmatprep.subr.mxu0 0.0
    %1253 = vmatpush1.msra.mxu0 0.0
    %1254 = vmatprep.subr.mxu0 0.0
    %1255 = vmatpush1.msra.mxu0 0.0
    %1256 = vmatprep.subr.mxu0 0.0
    %1257 = vmatpush1.msra.mxu0 0.0
    %1258 = vmatprep.subr.mxu0 0.0
    %1259 = vmatpush1.msra.mxu0 0.0
    %1260 = vmatprep.subr.mxu0 0.0
    %1261 = vmatpush1.msra.mxu0 0.0
    %1262 = vmatprep.subr.mxu0 0.0
    %1263 = vmatpush1.msra.mxu0 0.0
    %1264 = vmatprep.subr.mxu0 0.0
    %1265 = vmatpush1.msra.mxu0 0.0
    %1266 = vmatprep.subr.mxu0 0.0
    %1267 = vmatpush1.msra.mxu0 0.0
    %1268 = vmatprep.subr.mxu0 0.0
    %1269 = vmatpush1.msra.mxu0 0.0
    %1270 = vmatprep.subr.mxu0 0.0
    %1271 = vmatpush1.msra.mxu0 0.0
    %1272 = vmatprep.subr.mxu0 0.0
    %1273 = vmatpush1.msra.mxu0 0.0
    %1274 = vmatprep.subr.mxu0 0.0
    %1275 = vmatpush1.msra.mxu0 0.0
    %1276 = vmatprep.subr.mxu0 0.0
    %1277 = vmatpush1.msra.mxu0 0.0
    %1278 = vmatprep.subr.mxu0 0.0
    %1279 = vmatpush1.msra.mxu0 0.0
    %1280 = vmatprep.subr.mxu0 0.0
    %1281 = vmatpush1.msra.mxu0 0.0
    %1282 = vmatprep.subr.mxu0 0.0
    %1283 = vmatpush1.msra.mxu0 0.0
    %1284 = vmatprep.mubr.f32.mxu0 0.0
    %1285 = vmatmul.mubr.f32.gmra.mrb[0].mxu0 %v1217
    %v1286 = vpop.f32.mrb[0].mxu0
    %v1287 = vadd.f32 0.0, %v1286
    %v1288 = vpop.f32.mrb[0].mxu0
    %1289 = vdwg.mxu0
    %v1290 = vadd.f32 %v1219, %v1287
    %v1291 = vtanh.pop %v1290
    %s1292 = scalar_lea.vmem [#allocation3], 48
    %v1293 = vld [vmem:[%s1292] sm:$0xff]
    %1294 = vmatprep.subr.mxu0 0.0
    %1295 = vmatpush1.msra.mxu0 %v705
    %1296 = vmatprep.subr.mxu0 0.0
    %1297 = vmatpush1.msra.mxu0 %v706
    %1298 = vmatprep.subr.mxu0 0.0
    %1299 = vmatpush1.msra.mxu0 %v707
    %1300 = vmatprep.subr.mxu0 0.0
    %1301 = vmatpush1.msra.mxu0 %v708
    %1302 = vmatprep.subr.mxu0 0.0
    %1303 = vmatpush1.msra.mxu0 %v709
    %1304 = vmatprep.subr.mxu0 0.0
    %1305 = vmatpush1.msra.mxu0 %v710
    %1306 = vmatprep.subr.mxu0 0.0
    %1307 = vmatpush1.msra.mxu0 %v711
    %1308 = vmatprep.subr.mxu0 0.0
    %1309 = vmatpush1.msra.mxu0 %v712
    %1310 = vmatprep.subr.mxu0 0.0
    %1311 = vmatpush1.msra.mxu0 %v713
    %1312 = vmatprep.subr.mxu0 0.0
    %1313 = vmatpush1.msra.mxu0 %v714
    %1314 = vmatprep.subr.mxu0 0.0
    %1315 = vmatpush1.msra.mxu0 %v715
    %1316 = vmatprep.subr.mxu0 0.0
    %1317 = vmatpush1.msra.mxu0 %v716
    %1318 = vmatprep.subr.mxu0 0.0
    %1319 = vmatpush1.msra.mxu0 %v717
    %1320 = vmatprep.subr.mxu0 0.0
    %1321 = vmatpush1.msra.mxu0 %v718
    %1322 = vmatprep.subr.mxu0 0.0
    %1323 = vmatpush1.msra.mxu0 %v719
    %1324 = vmatprep.subr.mxu0 0.0
    %1325 = vmatpush1.msra.mxu0 %v720
    %1326 = vmatprep.subr.mxu0 0.0
    %1327 = vmatpush1.msra.mxu0 0.0
    %1328 = vmatprep.subr.mxu0 0.0
    %1329 = vmatpush1.msra.mxu0 0.0
    %1330 = vmatprep.subr.mxu0 0.0
    %1331 = vmatpush1.msra.mxu0 0.0
    %1332 = vmatprep.subr.mxu0 0.0
    %1333 = vmatpush1.msra.mxu0 0.0
    %1334 = vmatprep.subr.mxu0 0.0
    %1335 = vmatpush1.msra.mxu0 0.0
    %1336 = vmatprep.subr.mxu0 0.0
    %1337 = vmatpush1.msra.mxu0 0.0
    %1338 = vmatprep.subr.mxu0 0.0
    %1339 = vmatpush1.msra.mxu0 0.0
    %1340 = vmatprep.subr.mxu0 0.0
    %1341 = vmatpush1.msra.mxu0 0.0
    %1342 = vmatprep.subr.mxu0 0.0
    %1343 = vmatpush1.msra.mxu0 0.0
    %1344 = vmatprep.subr.mxu0 0.0
    %1345 = vmatpush1.msra.mxu0 0.0
    %1346 = vmatprep.subr.mxu0 0.0
    %1347 = vmatpush1.msra.mxu0 0.0
    %1348 = vmatprep.subr.mxu0 0.0
    %1349 = vmatpush1.msra.mxu0 0.0
    %1350 = vmatprep.subr.mxu0 0.0
    %1351 = vmatpush1.msra.mxu0 0.0
    %1352 = vmatprep.subr.mxu0 0.0
    %1353 = vmatpush1.msra.mxu0 0.0
    %1354 = vmatprep.subr.mxu0 0.0
    %1355 = vmatpush1.msra.mxu0 0.0
    %1356 = vmatprep.subr.mxu0 0.0
    %1357 = vmatpush1.msra.mxu0 0.0
    %1358 = vmatprep.mubr.f32.mxu0 0.0
    %1359 = vmatmul.mubr.f32.gmra.mrb[0].mxu0 %v1291
    %v1360 = vpop.f32.mrb[0].mxu0
    %v1361 = vadd.f32 0.0, %v1360
    %v1362 = vpop.f32.mrb[0].mxu0
    %1363 = vdwg.mxu0
    %v1364 = vadd.f32 %v1293, %v1361
    %v1365 = vtanh.pop %v1364
    %s1366 = scalar_lea.vmem [#allocation3], 56
    %v1367 = vld [vmem:[%s1366] sm:$0xff]
    %1368 = vmatprep.subr.mxu0 0.0
    %1369 = vmatpush1.msra.mxu0 %v705
    %1370 = vmatprep.subr.mxu0 0.0
    %1371 = vmatpush1.msra.mxu0 %v706
    %1372 = vmatprep.subr.mxu0 0.0
    %1373 = vmatpush1.msra.mxu0 %v707
    %1374 = vmatprep.subr.mxu0 0.0
    %1375 = vmatpush1.msra.mxu0 %v708
    %1376 = vmatprep.subr.mxu0 0.0
    %1377 = vmatpush1.msra.mxu0 %v709
    %1378 = vmatprep.subr.mxu0 0.0
    %1379 = vmatpush1.msra.mxu0 %v710
    %1380 = vmatprep.subr.mxu0 0.0
    %1381 = vmatpush1.msra.mxu0 %v711
    %1382 = vmatprep.subr.mxu0 0.0
    %1383 = vmatpush1.msra.mxu0 %v712
    %1384 = vmatprep.subr.mxu0 0.0
    %1385 = vmatpush1.msra.mxu0 %v713
    %1386 = vmatprep.subr.mxu0 0.0
    %1387 = vmatpush1.msra.mxu0 %v714
    %1388 = vmatprep.subr.mxu0 0.0
    %1389 = vmatpush1.msra.mxu0 %v715
    %1390 = vmatprep.subr.mxu0 0.0
    %1391 = vmatpush1.msra.mxu0 %v716
    %1392 = vmatprep.subr.mxu0 0.0
    %1393 = vmatpush1.msra.mxu0 %v717
    %1394 = vmatprep.subr.mxu0 0.0
    %1395 = vmatpush1.msra.mxu0 %v718
    %1396 = vmatprep.subr.mxu0 0.0
    %1397 = vmatpush1.msra.mxu0 %v719
    %1398 = vmatprep.subr.mxu0 0.0
    %1399 = vmatpush1.msra.mxu0 %v720
    %1400 = vmatprep.subr.mxu0 0.0
    %1401 = vmatpush1.msra.mxu0 0.0
    %1402 = vmatprep.subr.mxu0 0.0
    %1403 = vmatpush1.msra.mxu0 0.0
    %1404 = vmatprep.subr.mxu0 0.0
    %1405 = vmatpush1.msra.mxu0 0.0
    %1406 = vmatprep.subr.mxu0 0.0
    %1407 = vmatpush1.msra.mxu0 0.0
    %1408 = vmatprep.subr.mxu0 0.0
    %1409 = vmatpush1.msra.mxu0 0.0
    %1410 = vmatprep.subr.mxu0 0.0
    %1411 = vmatpush1.msra.mxu0 0.0
    %1412 = vmatprep.subr.mxu0 0.0
    %1413 = vmatpush1.msra.mxu0 0.0
    %1414 = vmatprep.subr.mxu0 0.0
    %1415 = vmatpush1.msra.mxu0 0.0
    %1416 = vmatprep.subr.mxu0 0.0
    %1417 = vmatpush1.msra.mxu0 0.0
    %1418 = vmatprep.subr.mxu0 0.0
    %1419 = vmatpush1.msra.mxu0 0.0
    %1420 = vmatprep.subr.mxu0 0.0
    %1421 = vmatpush1.msra.mxu0 0.0
    %1422 = vmatprep.subr.mxu0 0.0
    %1423 = vmatpush1.msra.mxu0 0.0
    %1424 = vmatprep.subr.mxu0 0.0
    %1425 = vmatpush1.msra.mxu0 0.0
    %1426 = vmatprep.subr.mxu0 0.0
    %1427 = vmatpush1.msra.mxu0 0.0
    %1428 = vmatprep.subr.mxu0 0.0
    %1429 = vmatpush1.msra.mxu0 0.0
    %1430 = vmatprep.subr.mxu0 0.0
    %1431 = vmatpush1.msra.mxu0 0.0
    %1432 = vmatprep.mubr.f32.mxu0 0.0
    %1433 = vmatmul.mubr.f32.gmra.mrb[0].mxu0 %v1365
    %v1434 = vpop.f32.mrb[0].mxu0
    %v1435 = vadd.f32 0.0, %v1434
    %v1436 = vpop.f32.mrb[0].mxu0
    %1437 = vdwg.mxu0
    %v1438 = vadd.f32 %v1367, %v1435
    %v1439 = vtanh.pop %v1438
    %v1440 = vld [vmem:[%s5] sm:$0xff]
    %v1441 = vld [vmem:[%s5 + $0x8] sm:$0xff]
    %v1442 = vld [vmem:[%s5 + $0x10] sm:$0xff]
    %v1443 = vld [vmem:[%s5 + $0x18] sm:$0xff]
    %v1444 = vld [vmem:[%s5 + $0x20] sm:$0xff]
    %v1445 = vld [vmem:[%s5 + $0x28] sm:$0xff]
    %v1446 = vld [vmem:[%s5 + $0x30] sm:$0xff]
    %v1447 = vld [vmem:[%s5 + $0x38] sm:$0xff]
    %v1448 = vld [vmem:[%s5 + $0x40] sm:$0xff]
    %v1449 = vld [vmem:[%s5 + $0x48] sm:$0xff]
    %v1450 = vld [vmem:[%s5 + $0x50] sm:$0xff]
    %v1451 = vld [vmem:[%s5 + $0x58] sm:$0xff]
    %v1452 = vld [vmem:[%s5 + $0x60] sm:$0xff]
    %v1453 = vld [vmem:[%s5 + $0x68] sm:$0xff]
    %v1454 = vld [vmem:[%s5 + $0x70] sm:$0xff]
    %v1455 = vld [vmem:[%s5 + $0x78] sm:$0xff]
    %v1456 = vld [vmem:[%s6] sm:$0x1]
    %v1458 = vlaneseq
    %v1459 = vshrl.u32 %v1458, 7
    %v1460 = vsub.s32 0, %v1459
    %v1461 = vrot.slane %v1456, %v1460
    %1463 = vmatprep.subr.mxu0 0.0
    %1464 = vmatpush1.msra.mxu0 %v1440
    %1465 = vmatprep.subr.mxu0 0.0
    %1466 = vmatpush1.msra.mxu0 %v1441
    %1467 = vmatprep.subr.mxu0 0.0
    %1468 = vmatpush1.msra.mxu0 %v1442
    %1469 = vmatprep.subr.mxu0 0.0
    %1470 = vmatpush1.msra.mxu0 %v1443
    %1471 = vmatprep.subr.mxu0 0.0
    %1472 = vmatpush1.msra.mxu0 %v1444
    %1473 = vmatprep.subr.mxu0 0.0
    %1474 = vmatpush1.msra.mxu0 %v1445
    %1475 = vmatprep.subr.mxu0 0.0
    %1476 = vmatpush1.msra.mxu0 %v1446
    %1477 = vmatprep.subr.mxu0 0.0
    %1478 = vmatpush1.msra.mxu0 %v1447
    %1479 = vmatprep.subr.mxu0 0.0
    %1480 = vmatpush1.msra.mxu0 %v1448
    %1481 = vmatprep.subr.mxu0 0.0
    %1482 = vmatpush1.msra.mxu0 %v1449
    %1483 = vmatprep.subr.mxu0 0.0
    %1484 = vmatpush1.msra.mxu0 %v1450
    %1485 = vmatprep.subr.mxu0 0.0
    %1486 = vmatpush1.msra.mxu0 %v1451
    %1487 = vmatprep.subr.mxu0 0.0
    %1488 = vmatpush1.msra.mxu0 %v1452
    %1489 = vmatprep.subr.mxu0 0.0
    %1490 = vmatpush1.msra.mxu0 %v1453
    %1491 = vmatprep.subr.mxu0 0.0
    %1492 = vmatpush1.msra.mxu0 %v1454
    %1493 = vmatprep.subr.mxu0 0.0
    %1494 = vmatpush1.msra.mxu0 %v1455
    %1495 = vmatprep.subr.mxu0 0.0
    %1496 = vmatpush1.msra.mxu0 0.0
    %1497 = vmatprep.subr.mxu0 0.0
    %1498 = vmatpush1.msra.mxu0 0.0
    %1499 = vmatprep.subr.mxu0 0.0
    %1500 = vmatpush1.msra.mxu0 0.0
    %1501 = vmatprep.subr.mxu0 0.0
    %1502 = vmatpush1.msra.mxu0 0.0
    %1503 = vmatprep.subr.mxu0 0.0
    %1504 = vmatpush1.msra.mxu0 0.0
    %1505 = vmatprep.subr.mxu0 0.0
    %1506 = vmatpush1.msra.mxu0 0.0
    %1507 = vmatprep.subr.mxu0 0.0
    %1508 = vmatpush1.msra.mxu0 0.0
    %1509 = vmatprep.subr.mxu0 0.0
    %1510 = vmatpush1.msra.mxu0 0.0
    %1511 = vmatprep.subr.mxu0 0.0
    %1512 = vmatpush1.msra.mxu0 0.0
    %1513 = vmatprep.subr.mxu0 0.0
    %1514 = vmatpush1.msra.mxu0 0.0
    %1515 = vmatprep.subr.mxu0 0.0
    %1516 = vmatpush1.msra.mxu0 0.0
    %1517 = vmatprep.subr.mxu0 0.0
    %1518 = vmatpush1.msra.mxu0 0.0
    %1519 = vmatprep.subr.mxu0 0.0
    %1520 = vmatpush1.msra.mxu0 0.0
    %1521 = vmatprep.subr.mxu0 0.0
    %1522 = vmatpush1.msra.mxu0 0.0
    %1523 = vmatprep.subr.mxu0 0.0
    %1524 = vmatpush1.msra.mxu0 0.0
    %1525 = vmatprep.subr.mxu0 0.0
    %1526 = vmatpush1.msra.mxu0 0.0
    %1527 = vmatprep.mubr.f32.mxu0 0.0
    %1528 = vmatmul.mubr.f32.gmra.mrb[0].mxu0 %v1439
    %v1529 = vpop.f32.mrb[0].mxu0
    %v1530 = vadd.f32 %v1461, %v1529
    %v1531 = vpop.f32.mrb[0].mxu0
    %1532 = vdwg.mxu0
    %1533 = vst [vmem:[%s7] sm:$0xff] %v1530
    // Predicated region
    $region42: #{_lambda_.1} parent=1 // pred_check
      _
    $region43: #{_lambda_.1} parent=1 // pred_check_branch
      %1535 = sbr.rel (0) target = $region45
    $region44: #{_lambda_.1} parent=1 // pred_region
      _
    $region45: #{_lambda_.1} parent=1 // pred_fallthru
      _
    // Predicated region
    $region46: #{_lambda_.1} parent=1 // pred_check
      _
    $region47: #{_lambda_.1} parent=1 // pred_check_branch
      %1537 = sbr.rel (0) target = $region49
    $region48: #{_lambda_.1} parent=1 // pred_region
      _
    $region49: #{_lambda_.1} parent=1 // pred_fallthru
      _
    %1538 = vsyncpa [#allocation5], 1
    %1539 = vsyncpa [#allocation7], 1

</llo_original>
